<compile_context>
chip_gen: v7x
topology: tpu7x:2x2x1
jax: 0.10.0
libtpu: 0.0.40
codegen_flags: <defaults>
</compile_context>

<pallas_src>
import functools
import math

import jax
import jax.numpy as jnp
import numpy as np
from jax import lax
from jax.experimental import pallas as pl
from jax.experimental.pallas import tpu as pltpu

_NEG_BIG = -1.0e30  # finite "masked" sentinel; avoids -inf - (-inf) = NaN in
                    # the running-max update for the fully-masked row 0.


def _masked_attn_kernel(qi_of_ref, ki_of_ref, xq_ref, xkv_ref, wq_ref, bq_ref,
                        wkv_ref, bkv_ref, o_ref, q_sc, m_sc, l_sc, acc_sc,
                        *, key_channels, tile, inv_sqrt_k, use_bf16):
    """Grid = (batch, packed lower-triangular (qi, ki) step).

    qi_of_ref / ki_of_ref : (T,) int32 in SMEM — query / kv tile idx per step.
    xq_ref  : (1, Cq, tile)   query-tile slice of x
    xkv_ref : (1, Ckv, tile)  kv-tile slice of x (+ extra channels)
    wq_ref  : (K, Cq),  bq_ref  : (K, 1)
    wkv_ref : (K+V, Ckv), bkv_ref : (K+V, 1)
    o_ref   : (1, V, tile)    output tile (written on the diagonal step)
    scratch : q_sc (K, tile), m_sc / l_sc (1, tile), acc_sc (V, tile)
    """
    K = key_channels
    t = pl.program_id(1)
    qi = qi_of_ref[t]
    ki = ki_of_ref[t]

    @pl.when(ki == 0)
    def _init():
        # Project the query tile once per (b, qi); fold 1/sqrt(K) into q.
        q = jnp.dot(wq_ref[...], xq_ref[0],
                    preferred_element_type=jnp.float32) + bq_ref[...]
        q_sc[...] = q * inv_sqrt_k
        m_sc[...] = jnp.full(m_sc.shape, _NEG_BIG, dtype=jnp.float32)
        l_sc[...] = jnp.zeros(l_sc.shape, dtype=jnp.float32)
        acc_sc[...] = jnp.zeros(acc_sc.shape, dtype=jnp.float32)

    def _process(masked):
        # key/value projection for this kv tile: (K+V, Ckv) @ (Ckv, tile).
        kv = jnp.dot(wkv_ref[...], xkv_ref[0],
                     preferred_element_type=jnp.float32) + bkv_ref[...]
        key = kv[:K, :]        # (K, tile)
        value = kv[K:, :]      # (V, tile)

        # s[j, i] = key[:, j] . q_scaled[:, i]   -> (tile_k, tile_q)
        s = lax.dot_general(key, q_sc[...], (((0,), (0,)), ((), ())),
                            preferred_element_type=jnp.float32)

        if masked:
            # Diagonal tile only: ki == qi and tq == tk, so the global index
            # offsets cancel and keep[j, i] = local_j < local_i.
            lj = lax.broadcasted_iota(jnp.int32, (tile, tile), 0)
            li = lax.broadcasted_iota(jnp.int32, (tile, tile), 1)
            s = jnp.where(lj < li, s, _NEG_BIG)

        m_prev = m_sc[...]                                        # (1, tq)
        m_new = jnp.maximum(m_prev, jnp.max(s, axis=0, keepdims=True))
        alpha = jnp.exp(m_prev - m_new)                           # (1, tq)
        z = s - m_new                                             # (tk, tq)
        if use_bf16:
            # v6e/v7x lever: bf16 exp + bf16 MXU operands, f32 accumulation.
            p = jnp.exp(z.astype(jnp.bfloat16))
            p_sum = jnp.sum(p.astype(jnp.float32), axis=0, keepdims=True)
            pv = jnp.dot(value.astype(jnp.bfloat16), p,
                         preferred_element_type=jnp.float32)
        else:
            p = jnp.exp(z)
            p_sum = jnp.sum(p, axis=0, keepdims=True)
            pv = jnp.dot(value, p, preferred_element_type=jnp.float32)
        l_sc[...] = alpha * l_sc[...] + p_sum
        acc_sc[...] = alpha * acc_sc[...] + pv
        m_sc[...] = m_new

    @pl.when(ki != qi)      # strictly-below-diagonal tile: fully unmasked
    def _full_tile():
        _process(masked=False)

    @pl.when(ki == qi)      # diagonal tile: mask, then finalize (last step
    def _diag_tile():       # of this query-tile group in the packed grid)
        _process(masked=True)
        inv = pl.reciprocal(l_sc[...] + 1e-6, approx=True)        # (1, tq)
        # Rows whose running max is still the sentinel never saw an unmasked
        # key (only global row 0); the reference yields exact zeros there.
        live = m_sc[...] > (0.5 * _NEG_BIG)                       # (1, tq)
        o_ref[0] = jnp.where(live, acc_sc[...] * inv, 0.0).astype(o_ref.dtype)


def _pick_tile(S, target):
    """Largest tile <= target that is a multiple of 128 dividing S (else S)."""
    if S <= 128 or S % 128 != 0:
        return S
    t = min(target, S)
    t -= t % 128
    while S % t != 0:
        t -= 128
    return t


def masked_attention(x_nchw, wq, bq, wkv, bkv, key_channels, value_channels,
                     kv_extra_nchw=None, *, tile=512, use_bf16=False):
    """Pallas-backed forward pass matching MaskedAttention.forward.

    x_nchw        : (N, Cq, H, W) float32
    wq            : (K, Cq)  query 1x1-conv weight (PyTorch (K,Cq,1,1) squeezed)
    bq            : (K,)
    wkv           : (K+V, Ckv) kv 1x1-conv weight
    bkv           : (K+V,)
    kv_extra_nchw : optional (N, Ce, H, W) extra channels concatenated for kv
    use_bf16      : bf16 exp / PV-matmul path (recommended on v6e/v7x only)
    returns       : (N, V, H, W) float32
    """
    N, Cq, H, W = x_nchw.shape
    S = H * W
    K, V = key_channels, value_channels

    # Channels-first, lane-dense layout: NCHW -> (N, C, S) is a pure reshape.
    x_ncs = x_nchw.reshape(N, Cq, S).astype(jnp.float32)
    if kv_extra_nchw is not None:
        extra = kv_extra_nchw.reshape(
            N, kv_extra_nchw.shape[1], S).astype(jnp.float32)
        xkv_ncs = jnp.concatenate([x_ncs, extra], axis=1)
    else:
        xkv_ncs = x_ncs  # same array, no duplicate HBM buffer
    Ckv = xkv_ncs.shape[1]

    # One tile size for both q and kv so the diagonal-tile classification and
    # the local (offset-free) causal mask stay exact.
    tsz = _pick_tile(S, tile)
    nq = S // tsz

    # Packed lower-triangular schedule: for each qi, ki = 0..qi ascending, so
    # the init step (ki==0) is first and the diagonal/finalize step is last in
    # each query-tile group (output fully written before its block changes).
    qi_of = np.repeat(np.arange(nq, dtype=np.int32),
                      np.arange(1, nq + 1, dtype=np.int32))
    ki_of = np.concatenate(
        [np.arange(q + 1, dtype=np.int32) for q in range(nq)])
    T = int(qi_of.shape[0])
    qi_of = jnp.asarray(qi_of)
    ki_of = jnp.asarray(ki_of)

    wq_f = wq.astype(jnp.float32)                     # (K, Cq)
    wkv_f = wkv.astype(jnp.float32)                   # (K+V, Ckv)
    bq_c = bq.reshape(K, 1).astype(jnp.float32)
    bkv_c = bkv.reshape(K + V, 1).astype(jnp.float32)

    kernel = functools.partial(
        _masked_attn_kernel, key_channels=K, tile=tsz,
        inv_sqrt_k=float(1.0 / math.sqrt(K)), use_bf16=use_bf16)

    out_nvs = pl.pallas_call(
        kernel,
        out_shape=jax.ShapeDtypeStruct((N, V, S), jnp.float32),
        grid_spec=pltpu.PrefetchScalarGridSpec(
            num_scalar_prefetch=2,
            grid=(N, T),
            in_specs=[
                pl.BlockSpec((1, Cq, tsz),
                             lambda b, t, qt, kt: (b, 0, qt[t])),
                pl.BlockSpec((1, Ckv, tsz),
                             lambda b, t, qt, kt: (b, 0, kt[t])),
                pl.BlockSpec((K, Cq), lambda b, t, qt, kt: (0, 0)),
                pl.BlockSpec((K, 1), lambda b, t, qt, kt: (0, 0)),
                pl.BlockSpec((K + V, Ckv), lambda b, t, qt, kt: (0, 0)),
                pl.BlockSpec((K + V, 1), lambda b, t, qt, kt: (0, 0)),
            ],
            out_specs=pl.BlockSpec((1, V, tsz),
                                   lambda b, t, qt, kt: (b, 0, qt[t])),
            scratch_shapes=[
                pltpu.VMEM((K, tsz), jnp.float32),   # scaled q tile
                pltpu.VMEM((1, tsz), jnp.float32),   # running max
                pltpu.VMEM((1, tsz), jnp.float32),   # running sum
                pltpu.VMEM((V, tsz), jnp.float32),   # PV accumulator
            ],
        ),
        compiler_params=pltpu.CompilerParams(
            dimension_semantics=("parallel", "arbitrary"),
            vmem_limit_bytes=32 * 1024 * 1024),
    )(qi_of, ki_of, x_ncs, xkv_ncs, wq_f, bq_c, wkv_f, bkv_c)

    # (N, V, S) -> (N, V, H, W): pure reshape, no transpose.
    return out_nvs.reshape(N, V, H, W)


def _reference(x_nchw, wq, bq, wkv, bkv, K, V, kv_extra_nchw=None):
    """Pure-JAX replica of the PyTorch forward (for verification)."""
    N, Cq, H, W = x_nchw.shape
    S = H * W
    query = jnp.einsum('nchw,kc->nkhw', x_nchw, wq) + bq[None, :, None, None]
    xkv = x_nchw if kv_extra_nchw is None else jnp.concatenate(
        [x_nchw, kv_extra_nchw], axis=1)
    kv = jnp.einsum('nchw,kc->nkhw', xkv, wkv) + bkv[None, :, None, None]
    query = query.reshape(N, K, S)
    key = kv[:, :K].reshape(N, K, S)
    value = kv[:, K:].reshape(N, V, S)
    mask = jnp.tril(jnp.ones((S, S), jnp.float32), k=-1)[None]
    probs = jnp.einsum('nks,nkt->nst', query, key) - (1.0 - mask) * 1e10
    probs = probs - jnp.max(probs, axis=-1, keepdims=True)
    probs = jnp.exp(probs / np.sqrt(K)) * mask
    probs = probs / (jnp.sum(probs, axis=-1, keepdims=True) + 1e-6)
    out = jnp.einsum('nvt,nst->nvs', value, probs)
    return out.reshape(N, V, H, W)


if __name__ == "__main__":
    # N=2, query_channels=4, K=V=8, H=W=16 (S=256).  tile=128 so the packed
    # grid exercises init, off-diagonal, diagonal, and finalize steps.
    N, Cq, H, W = 2, 4, 16, 16
    K, V, Ce = 8, 8, 4

    key0 = jax.random.PRNGKey(0)
    k1, k2, k3, k4, k5, k6, k7, k8 = jax.random.split(key0, 8)

    x = jax.random.normal(k1, (N, Cq, H, W), dtype=jnp.float32)
    # Conv2d(kernel_size=1) weights: (out, in, 1, 1) stored squeezed (out, in).
    wq = 0.1 * jax.random.normal(k2, (K, Cq), dtype=jnp.float32)
    bq = 0.1 * jax.random.normal(k3, (K,), dtype=jnp.float32)
    wkv = 0.1 * jax.random.normal(k4, (K + V, Cq), dtype=jnp.float32)
    bkv = 0.1 * jax.random.normal(k5, (K + V,), dtype=jnp.float32)

    # Exact-parity f32 path.
    out = jax.block_until_ready(
        masked_attention(x, wq, bq, wkv, bkv, K, V, tile=128))
    ref = jax.block_until_ready(_reference(x, wq, bq, wkv, bkv, K, V))
    assert out.shape == (N, V, H, W), out.shape
    np.testing.assert_allclose(np.asarray(out), np.asarray(ref),
                               rtol=1e-3, atol=1e-3)

    # bf16 exp / PV-matmul lever (v6e/v7x) + kv_extra_channels branch, checked
    # against the f32 reference at a relaxed tolerance.
    extra = jax.random.normal(k6, (N, Ce, H, W), dtype=jnp.float32)
    wkv2 = 0.1 * jax.random.normal(k7, (K + V, Cq + Ce), dtype=jnp.float32)
    bkv2 = 0.1 * jax.random.normal(k8, (K + V,), dtype=jnp.float32)
    out2 = jax.block_until_ready(
        masked_attention(x, wq, bq, wkv2, bkv2, K, V, kv_extra_nchw=extra,
                         tile=128, use_bf16=True))
    ref2 = jax.block_until_ready(
        _reference(x, wq, bq, wkv2, bkv2, K, V, kv_extra_nchw=extra))
    np.testing.assert_allclose(np.asarray(out2), np.asarray(ref2),
                               rtol=5e-2, atol=5e-2)

    print("KERNEL_OK")
</pallas_src>

<mosaic_0001>
module attributes {stable_mosaic.version = 11 : i64} {
  func.func @_masked_attn_kernel(%arg0: i32, %arg1: i32, %arg2: memref<3xi32, #tpu.memory_space<smem>>, %arg3: memref<3xi32, #tpu.memory_space<smem>>, %arg4: memref<1x4x128xf32, #tpu.memory_space<vmem>>, %arg5: memref<1x4x128xf32, #tpu.memory_space<vmem>>, %arg6: memref<8x4xf32, #tpu.memory_space<vmem>>, %arg7: memref<8x1xf32, #tpu.memory_space<vmem>>, %arg8: memref<16x4xf32, #tpu.memory_space<vmem>>, %arg9: memref<16x1xf32, #tpu.memory_space<vmem>>, %arg10: memref<1x8x128xf32, #tpu.memory_space<vmem>>, %arg11: memref<8x128xf32, #tpu.memory_space<vmem>>, %arg12: memref<1x128xf32, #tpu.memory_space<vmem>>, %arg13: memref<1x128xf32, #tpu.memory_space<vmem>>, %arg14: memref<8x128xf32, #tpu.memory_space<vmem>>) attributes {dimension_semantics = [#tpu.dimension_semantics<parallel>, #tpu.dimension_semantics<arbitrary>], iteration_bounds = array<i64: 2, 3>, scalar_prefetch = 2 : i64, scratch_operands = 4 : i64, tpu.core_type = #tpu.core_type<tc>, window_params = [{transform_indices = @transform_0, window_bounds = array<i64: 1, 4, 128>}, {transform_indices = @transform_1, window_bounds = array<i64: 1, 4, 128>}, {pipeline_mode = #tpu.pipeline_mode<synchronous>, transform_indices = @transform_2, window_bounds = array<i64: 8, 4>}, {pipeline_mode = #tpu.pipeline_mode<synchronous>, transform_indices = @transform_3, window_bounds = array<i64: 8, 1>}, {pipeline_mode = #tpu.pipeline_mode<synchronous>, transform_indices = @transform_4, window_bounds = array<i64: 16, 4>}, {pipeline_mode = #tpu.pipeline_mode<synchronous>, transform_indices = @transform_5, window_bounds = array<i64: 16, 1>}, {transform_indices = @transform_6, window_bounds = array<i64: 1, 8, 128>}]} {
    %0 = arith.index_cast %arg1 : i32 to index
    %1 = memref.load %arg2[%0] : memref<3xi32, #tpu.memory_space<smem>>
    %2 = arith.index_cast %arg1 : i32 to index
    %3 = memref.load %arg3[%2] : memref<3xi32, #tpu.memory_space<smem>>
    %c0_i32 = arith.constant 0 : i32
    %4 = arith.cmpi eq, %3, %c0_i32 : i32
    %5 = arith.extui %4 : i1 to i32
    %c0_i32_0 = arith.constant 0 : i32
    %6 = arith.cmpi ne, %5, %c0_i32_0 : i32
    scf.if %6 {
      %c0 = arith.constant 0 : index
      %c0_3 = arith.constant 0 : index
      %13 = vector.load %arg6[%c0, %c0_3] : memref<8x4xf32, #tpu.memory_space<vmem>>, vector<8x4xf32>
      %c0_4 = arith.constant 0 : index
      %c0_5 = arith.constant 0 : index
      %c0_6 = arith.constant 0 : index
      %14 = vector.load %arg4[%c0_4, %c0_5, %c0_6] : memref<1x4x128xf32, #tpu.memory_space<vmem>>, vector<1x4x128xf32>
      %15 = vector.shape_cast %14 : vector<1x4x128xf32> to vector<4x128xf32>
      %cst = arith.constant dense<0.000000e+00> : vector<8x128xf32>
      %16 = tpu.matmul %13, %15, %cst {dimension_numbers = #tpu.dot_dimension_numbers<[1], [0], [0], [1], [0, 0, 1, 1], [], []>} : vector<8x4xf32>, vector<4x128xf32>, vector<8x128xf32> -> vector<8x128xf32>
      %c0_7 = arith.constant 0 : index
      %c0_8 = arith.constant 0 : index
      %17 = vector.load %arg7[%c0_7, %c0_8] : memref<8x1xf32, #tpu.memory_space<vmem>>, vector<8x1xf32>
      %18 = vector.broadcast %17 : vector<8x1xf32> to vector<8x128xf32>
      %19 = arith.addf %16, %18 : vector<8x128xf32>
      %cst_9 = arith.constant 0.353553385 : f32
      %20 = vector.broadcast %cst_9 : f32 to vector<8x128xf32>
      %21 = arith.mulf %19, %20 : vector<8x128xf32>
      %c0_10 = arith.constant 0 : index
      %c0_11 = arith.constant 0 : index
      %22 = vector.load %arg11[%c0_10, %c0_11] : memref<8x128xf32, #tpu.memory_space<vmem>>, vector<8x128xf32>
      tpu.vector_store %arg11[%c0_10, %c0_11], %21 {strides = array<i32>} : memref<8x128xf32, #tpu.memory_space<vmem>>, vector<8x128xf32>,
      %cst_12 = arith.constant -1.000000e+30 : f32
      %23 = vector.broadcast %cst_12 : f32 to vector<1x128xf32>
      %c0_13 = arith.constant 0 : index
      %c0_14 = arith.constant 0 : index
      %24 = vector.load %arg12[%c0_13, %c0_14] : memref<1x128xf32, #tpu.memory_space<vmem>>, vector<1x128xf32>
      tpu.vector_store %arg12[%c0_13, %c0_14], %23 {strides = array<i32>} : memref<1x128xf32, #tpu.memory_space<vmem>>, vector<1x128xf32>,
      %cst_15 = arith.constant 0.000000e+00 : f32
      %25 = vector.broadcast %cst_15 : f32 to vector<1x128xf32>
      %c0_16 = arith.constant 0 : index
      %c0_17 = arith.constant 0 : index
      %26 = vector.load %arg13[%c0_16, %c0_17] : memref<1x128xf32, #tpu.memory_space<vmem>>, vector<1x128xf32>
      tpu.vector_store %arg13[%c0_16, %c0_17], %25 {strides = array<i32>} : memref<1x128xf32, #tpu.memory_space<vmem>>, vector<1x128xf32>,
      %cst_18 = arith.constant 0.000000e+00 : f32
      %27 = vector.broadcast %cst_18 : f32 to vector<8x128xf32>
      %c0_19 = arith.constant 0 : index
      %c0_20 = arith.constant 0 : index
      %28 = vector.load %arg14[%c0_19, %c0_20] : memref<8x128xf32, #tpu.memory_space<vmem>>, vector<8x128xf32>
      tpu.vector_store %arg14[%c0_19, %c0_20], %27 {strides = array<i32>} : memref<8x128xf32, #tpu.memory_space<vmem>>, vector<8x128xf32>,
    } else {
    }
    %7 = arith.cmpi ne, %3, %1 : i32
    %8 = arith.extui %7 : i1 to i32
    %c0_i32_1 = arith.constant 0 : i32
    %9 = arith.cmpi ne, %8, %c0_i32_1 : i32
    scf.if %9 {
      %c0 = arith.constant 0 : index
      %c0_3 = arith.constant 0 : index
      %13 = vector.load %arg8[%c0, %c0_3] : memref<16x4xf32, #tpu.memory_space<vmem>>, vector<16x4xf32>
      %c0_4 = arith.constant 0 : index
      %c0_5 = arith.constant 0 : index
      %c0_6 = arith.constant 0 : index
      %14 = vector.load %arg5[%c0_4, %c0_5, %c0_6] : memref<1x4x128xf32, #tpu.memory_space<vmem>>, vector<1x4x128xf32>
      %15 = vector.shape_cast %14 : vector<1x4x128xf32> to vector<4x128xf32>
      %cst = arith.constant dense<0.000000e+00> : vector<16x128xf32>
      %16 = tpu.matmul %13, %15, %cst {dimension_numbers = #tpu.dot_dimension_numbers<[1], [0], [0], [1], [0, 0, 1, 1], [], []>} : vector<16x4xf32>, vector<4x128xf32>, vector<16x128xf32> -> vector<16x128xf32>
      %c0_7 = arith.constant 0 : index
      %c0_8 = arith.constant 0 : index
      %17 = vector.load %arg9[%c0_7, %c0_8] : memref<16x1xf32, #tpu.memory_space<vmem>>, vector<16x1xf32>
      %18 = vector.broadcast %17 : vector<16x1xf32> to vector<16x128xf32>
      %19 = arith.addf %16, %18 : vector<16x128xf32>
      %20 = vector.extract_strided_slice %19 {offsets = [0, 0], sizes = [8, 128], strides = [1, 1]} : vector<16x128xf32> to vector<8x128xf32>
      %21 = vector.extract_strided_slice %19 {offsets = [8, 0], sizes = [8, 128], strides = [1, 1]} : vector<16x128xf32> to vector<8x128xf32>
      %c0_9 = arith.constant 0 : index
      %c0_10 = arith.constant 0 : index
      %22 = vector.load %arg11[%c0_9, %c0_10] : memref<8x128xf32, #tpu.memory_space<vmem>>, vector<8x128xf32>
      %cst_11 = arith.constant dense<0.000000e+00> : vector<128x128xf32>
      %23 = tpu.matmul %20, %22, %cst_11 {dimension_numbers = #tpu.dot_dimension_numbers<[0], [0], [1], [1], [0, 1, 1, 1], [], []>} : vector<8x128xf32>, vector<8x128xf32>, vector<128x128xf32> -> vector<128x128xf32>
      %c0_12 = arith.constant 0 : index
      %c0_13 = arith.constant 0 : index
      %24 = vector.load %arg12[%c0_12, %c0_13] : memref<1x128xf32, #tpu.memory_space<vmem>>, vector<1x128xf32>
      %cst_14 = arith.constant dense<0xFF800000> : vector<128xf32>
      %25 = vector.multi_reduction <maximumf>, %23, %cst_14 [0] : vector<128x128xf32> to vector<128xf32>
      %26 = vector.shape_cast %25 : vector<128xf32> to vector<1x128xf32>
      %27 = arith.maximumf %24, %26 : vector<1x128xf32>
      %28 = arith.subf %24, %27 : vector<1x128xf32>
      %29 = math.exp %28 : vector<1x128xf32>
      %30 = vector.broadcast %27 : vector<1x128xf32> to vector<128x128xf32>
      %31 = arith.subf %23, %30 : vector<128x128xf32>
      %32 = math.exp %31 : vector<128x128xf32>
      %cst_15 = arith.constant dense<0.000000e+00> : vector<128xf32>
      %33 = vector.multi_reduction <add>, %32, %cst_15 [0] : vector<128x128xf32> to vector<128xf32>
      %34 = vector.shape_cast %33 : vector<128xf32> to vector<1x128xf32>
      %cst_16 = arith.constant dense<0.000000e+00> : vector<8x128xf32>
      %35 = tpu.matmul %21, %32, %cst_16 {dimension_numbers = #tpu.dot_dimension_numbers<[1], [0], [0], [1], [0, 0, 1, 1], [], []>} : vector<8x128xf32>, vector<128x128xf32>, vector<8x128xf32> -> vector<8x128xf32>
      %c0_17 = arith.constant 0 : index
      %c0_18 = arith.constant 0 : index
      %36 = vector.load %arg13[%c0_17, %c0_18] : memref<1x128xf32, #tpu.memory_space<vmem>>, vector<1x128xf32>
      %37 = arith.mulf %29, %36 : vector<1x128xf32>
      %38 = arith.addf %37, %34 : vector<1x128xf32>
      %c0_19 = arith.constant 0 : index
      %c0_20 = arith.constant 0 : index
      %39 = vector.load %arg13[%c0_19, %c0_20] : memref<1x128xf32, #tpu.memory_space<vmem>>, vector<1x128xf32>
      tpu.vector_store %arg13[%c0_19, %c0_20], %38 {strides = array<i32>} : memref<1x128xf32, #tpu.memory_space<vmem>>, vector<1x128xf32>,
      %c0_21 = arith.constant 0 : index
      %c0_22 = arith.constant 0 : index
      %40 = vector.load %arg14[%c0_21, %c0_22] : memref<8x128xf32, #tpu.memory_space<vmem>>, vector<8x128xf32>
      %41 = vector.broadcast %29 : vector<1x128xf32> to vector<8x128xf32>
      %42 = arith.mulf %41, %40 : vector<8x128xf32>
      %43 = arith.addf %42, %35 : vector<8x128xf32>
      %c0_23 = arith.constant 0 : index
      %c0_24 = arith.constant 0 : index
      %44 = vector.load %arg14[%c0_23, %c0_24] : memref<8x128xf32, #tpu.memory_space<vmem>>, vector<8x128xf32>
      tpu.vector_store %arg14[%c0_23, %c0_24], %43 {strides = array<i32>} : memref<8x128xf32, #tpu.memory_space<vmem>>, vector<8x128xf32>,
      %c0_25 = arith.constant 0 : index
      %c0_26 = arith.constant 0 : index
      %45 = vector.load %arg12[%c0_25, %c0_26] : memref<1x128xf32, #tpu.memory_space<vmem>>, vector<1x128xf32>
      tpu.vector_store %arg12[%c0_25, %c0_26], %27 {strides = array<i32>} : memref<1x128xf32, #tpu.memory_space<vmem>>, vector<1x128xf32>,
    } else {
    }
    %10 = arith.cmpi eq, %3, %1 : i32
    %11 = arith.extui %10 : i1 to i32
    %c0_i32_2 = arith.constant 0 : i32
    %12 = arith.cmpi ne, %11, %c0_i32_2 : i32
    scf.if %12 {
      %c0 = arith.constant 0 : index
      %c0_3 = arith.constant 0 : index
      %13 = vector.load %arg8[%c0, %c0_3] : memref<16x4xf32, #tpu.memory_space<vmem>>, vector<16x4xf32>
      %c0_4 = arith.constant 0 : index
      %c0_5 = arith.constant 0 : index
      %c0_6 = arith.constant 0 : index
      %14 = vector.load %arg5[%c0_4, %c0_5, %c0_6] : memref<1x4x128xf32, #tpu.memory_space<vmem>>, vector<1x4x128xf32>
      %15 = vector.shape_cast %14 : vector<1x4x128xf32> to vector<4x128xf32>
      %cst = arith.constant dense<0.000000e+00> : vector<16x128xf32>
      %16 = tpu.matmul %13, %15, %cst {dimension_numbers = #tpu.dot_dimension_numbers<[1], [0], [0], [1], [0, 0, 1, 1], [], []>} : vector<16x4xf32>, vector<4x128xf32>, vector<16x128xf32> -> vector<16x128xf32>
      %c0_7 = arith.constant 0 : index
      %c0_8 = arith.constant 0 : index
      %17 = vector.load %arg9[%c0_7, %c0_8] : memref<16x1xf32, #tpu.memory_space<vmem>>, vector<16x1xf32>
      %18 = vector.broadcast %17 : vector<16x1xf32> to vector<16x128xf32>
      %19 = arith.addf %16, %18 : vector<16x128xf32>
      %20 = vector.extract_strided_slice %19 {offsets = [0, 0], sizes = [8, 128], strides = [1, 1]} : vector<16x128xf32> to vector<8x128xf32>
      %21 = vector.extract_strided_slice %19 {offsets = [8, 0], sizes = [8, 128], strides = [1, 1]} : vector<16x128xf32> to vector<8x128xf32>
      %c0_9 = arith.constant 0 : index
      %c0_10 = arith.constant 0 : index
      %22 = vector.load %arg11[%c0_9, %c0_10] : memref<8x128xf32, #tpu.memory_space<vmem>>, vector<8x128xf32>
      %cst_11 = arith.constant dense<0.000000e+00> : vector<128x128xf32>
      %23 = tpu.matmul %20, %22, %cst_11 {dimension_numbers = #tpu.dot_dimension_numbers<[0], [0], [1], [1], [0, 1, 1, 1], [], []>} : vector<8x128xf32>, vector<8x128xf32>, vector<128x128xf32> -> vector<128x128xf32>
      %24 = tpu.iota {dimensions = array<i32: 0>} : vector<128x128xi32>
      %25 = tpu.iota {dimensions = array<i32: 1>} : vector<128x128xi32>
      %26 = arith.cmpi slt, %24, %25 : vector<128x128xi32>
      %cst_12 = arith.constant -1.000000e+30 : f32
      %27 = vector.broadcast %cst_12 : f32 to vector<128x128xf32>
      %28 = arith.select %26, %23, %27 : vector<128x128xi1>, vector<128x128xf32>
      %c0_13 = arith.constant 0 : index
      %c0_14 = arith.constant 0 : index
      %29 = vector.load %arg12[%c0_13, %c0_14] : memref<1x128xf32, #tpu.memory_space<vmem>>, vector<1x128xf32>
      %cst_15 = arith.constant dense<0xFF800000> : vector<128xf32>
      %30 = vector.multi_reduction <maximumf>, %28, %cst_15 [0] : vector<128x128xf32> to vector<128xf32>
      %31 = vector.shape_cast %30 : vector<128xf32> to vector<1x128xf32>
      %32 = arith.maximumf %29, %31 : vector<1x128xf32>
      %33 = arith.subf %29, %32 : vector<1x128xf32>
      %34 = math.exp %33 : vector<1x128xf32>
      %35 = vector.broadcast %32 : vector<1x128xf32> to vector<128x128xf32>
      %36 = arith.subf %28, %35 : vector<128x128xf32>
      %37 = math.exp %36 : vector<128x128xf32>
      %cst_16 = arith.constant dense<0.000000e+00> : vector<128xf32>
      %38 = vector.multi_reduction <add>, %37, %cst_16 [0] : vector<128x128xf32> to vector<128xf32>
      %39 = vector.shape_cast %38 : vector<128xf32> to vector<1x128xf32>
      %cst_17 = arith.constant dense<0.000000e+00> : vector<8x128xf32>
      %40 = tpu.matmul %21, %37, %cst_17 {dimension_numbers = #tpu.dot_dimension_numbers<[1], [0], [0], [1], [0, 0, 1, 1], [], []>} : vector<8x128xf32>, vector<128x128xf32>, vector<8x128xf32> -> vector<8x128xf32>
      %c0_18 = arith.constant 0 : index
      %c0_19 = arith.constant 0 : index
      %41 = vector.load %arg13[%c0_18, %c0_19] : memref<1x128xf32, #tpu.memory_space<vmem>>, vector<1x128xf32>
      %42 = arith.mulf %34, %41 : vector<1x128xf32>
      %43 = arith.addf %42, %39 : vector<1x128xf32>
      %c0_20 = arith.constant 0 : index
      %c0_21 = arith.constant 0 : index
      %44 = vector.load %arg13[%c0_20, %c0_21] : memref<1x128xf32, #tpu.memory_space<vmem>>, vector<1x128xf32>
      tpu.vector_store %arg13[%c0_20, %c0_21], %43 {strides = array<i32>} : memref<1x128xf32, #tpu.memory_space<vmem>>, vector<1x128xf32>,
      %c0_22 = arith.constant 0 : index
      %c0_23 = arith.constant 0 : index
      %45 = vector.load %arg14[%c0_22, %c0_23] : memref<8x128xf32, #tpu.memory_space<vmem>>, vector<8x128xf32>
      %46 = vector.broadcast %34 : vector<1x128xf32> to vector<8x128xf32>
      %47 = arith.mulf %46, %45 : vector<8x128xf32>
      %48 = arith.addf %47, %40 : vector<8x128xf32>
      %c0_24 = arith.constant 0 : index
      %c0_25 = arith.constant 0 : index
      %49 = vector.load %arg14[%c0_24, %c0_25] : memref<8x128xf32, #tpu.memory_space<vmem>>, vector<8x128xf32>
      tpu.vector_store %arg14[%c0_24, %c0_25], %48 {strides = array<i32>} : memref<8x128xf32, #tpu.memory_space<vmem>>, vector<8x128xf32>,
      %c0_26 = arith.constant 0 : index
      %c0_27 = arith.constant 0 : index
      %50 = vector.load %arg12[%c0_26, %c0_27] : memref<1x128xf32, #tpu.memory_space<vmem>>, vector<1x128xf32>
      tpu.vector_store %arg12[%c0_26, %c0_27], %32 {strides = array<i32>} : memref<1x128xf32, #tpu.memory_space<vmem>>, vector<1x128xf32>,
      %c0_28 = arith.constant 0 : index
      %c0_29 = arith.constant 0 : index
      %51 = vector.load %arg13[%c0_28, %c0_29] : memref<1x128xf32, #tpu.memory_space<vmem>>, vector<1x128xf32>
      %cst_30 = arith.constant 9.99999997E-7 : f32
      %52 = vector.broadcast %cst_30 : f32 to vector<1x128xf32>
      %53 = arith.addf %51, %52 : vector<1x128xf32>
      %54 = tpu.reciprocal %53 {approx = true} : vector<1x128xf32> -> vector<1x128xf32>
      %c0_31 = arith.constant 0 : index
      %c0_32 = arith.constant 0 : index
      %55 = vector.load %arg12[%c0_31, %c0_32] : memref<1x128xf32, #tpu.memory_space<vmem>>, vector<1x128xf32>
      %cst_33 = arith.constant -5.000000e+29 : f32
      %56 = vector.broadcast %cst_33 : f32 to vector<1x128xf32>
      %57 = arith.cmpf ogt, %55, %56 : vector<1x128xf32>
      %c0_34 = arith.constant 0 : index
      %c0_35 = arith.constant 0 : index
      %58 = vector.load %arg14[%c0_34, %c0_35] : memref<8x128xf32, #tpu.memory_space<vmem>>, vector<8x128xf32>
      %59 = vector.broadcast %54 : vector<1x128xf32> to vector<8x128xf32>
      %60 = arith.mulf %58, %59 : vector<8x128xf32>
      %cst_36 = arith.constant 0.000000e+00 : f32
      %61 = vector.shape_cast %57 : vector<1x128xi1> to vector<1x128xi1>
      %62 = vector.broadcast %61 : vector<1x128xi1> to vector<8x128xi1>
      %63 = vector.broadcast %cst_36 : f32 to vector<8x128xf32>
      %64 = arith.select %62, %60, %63 : vector<8x128xi1>, vector<8x128xf32>
      %c0_37 = arith.constant 0 : index
      %c0_38 = arith.constant 0 : index
      %c0_39 = arith.constant 0 : index
      %65 = vector.load %arg10[%c0_37, %c0_38, %c0_39] : memref<1x8x128xf32, #tpu.memory_space<vmem>>, vector<1x8x128xf32>
      %66 = vector.shape_cast %65 : vector<1x8x128xf32> to vector<8x128xf32>
      %67 = vector.shape_cast %64 : vector<8x128xf32> to vector<1x8x128xf32>
      tpu.vector_store %arg10[%c0_37, %c0_38, %c0_39], %67 {strides = array<i32>} : memref<1x8x128xf32, #tpu.memory_space<vmem>>, vector<1x8x128xf32>,
    } else {
    }
    return
  }
  func.func @transform_0(%arg0: i32, %arg1: i32, %arg2: memref<3xi32, #tpu.memory_space<smem>>, %arg3: memref<3xi32, #tpu.memory_space<smem>>) -> (i32, i32, i32) {
    %0 = arith.index_cast %arg1 : i32 to index
    %1 = memref.load %arg2[%0] : memref<3xi32, #tpu.memory_space<smem>>
    %c0_i32 = arith.constant 0 : i32
    %c0_i32_0 = arith.constant 0 : i32
    return %arg0, %c0_i32, %1 : i32, i32, i32
  }
  func.func @transform_1(%arg0: i32, %arg1: i32, %arg2: memref<3xi32, #tpu.memory_space<smem>>, %arg3: memref<3xi32, #tpu.memory_space<smem>>) -> (i32, i32, i32) {
    %0 = arith.index_cast %arg1 : i32 to index
    %1 = memref.load %arg3[%0] : memref<3xi32, #tpu.memory_space<smem>>
    %c0_i32 = arith.constant 0 : i32
    %c0_i32_0 = arith.constant 0 : i32
    return %arg0, %c0_i32, %1 : i32, i32, i32
  }
  func.func @transform_2(%arg0: i32, %arg1: i32, %arg2: memref<3xi32, #tpu.memory_space<smem>>, %arg3: memref<3xi32, #tpu.memory_space<smem>>) -> (i32, i32) {
    %c0_i32 = arith.constant 0 : i32
    %c0_i32_0 = arith.constant 0 : i32
    %c0_i32_1 = arith.constant 0 : i32
    return %c0_i32, %c0_i32_0 : i32, i32
  }
  func.func @transform_3(%arg0: i32, %arg1: i32, %arg2: memref<3xi32, #tpu.memory_space<smem>>, %arg3: memref<3xi32, #tpu.memory_space<smem>>) -> (i32, i32) {
    %c0_i32 = arith.constant 0 : i32
    %c0_i32_0 = arith.constant 0 : i32
    %c0_i32_1 = arith.constant 0 : i32
    return %c0_i32, %c0_i32_0 : i32, i32
  }
  func.func @transform_4(%arg0: i32, %arg1: i32, %arg2: memref<3xi32, #tpu.memory_space<smem>>, %arg3: memref<3xi32, #tpu.memory_space<smem>>) -> (i32, i32) {
    %c0_i32 = arith.constant 0 : i32
    %c0_i32_0 = arith.constant 0 : i32
    %c0_i32_1 = arith.constant 0 : i32
    return %c0_i32, %c0_i32_0 : i32, i32
  }
  func.func @transform_5(%arg0: i32, %arg1: i32, %arg2: memref<3xi32, #tpu.memory_space<smem>>, %arg3: memref<3xi32, #tpu.memory_space<smem>>) -> (i32, i32) {
    %c0_i32 = arith.constant 0 : i32
    %c0_i32_0 = arith.constant 0 : i32
    %c0_i32_1 = arith.constant 0 : i32
    return %c0_i32, %c0_i32_0 : i32, i32
  }
  func.func @transform_6(%arg0: i32, %arg1: i32, %arg2: memref<3xi32, #tpu.memory_space<smem>>, %arg3: memref<3xi32, #tpu.memory_space<smem>>) -> (i32, i32, i32) {
    %0 = arith.index_cast %arg1 : i32 to index
    %1 = memref.load %arg2[%0] : memref<3xi32, #tpu.memory_space<smem>>
    %c0_i32 = arith.constant 0 : i32
    %c0_i32_0 = arith.constant 0 : i32
    return %arg0, %c0_i32, %1 : i32, i32, i32
  }
}

</mosaic_0001>

<llo_original>
// kernel: tpu_custom_call.1
$region0: #{tpu_custom_call.1}
  #allocation0 [shape = 'u32[]', space=smem, size = 0x4, offset = 0x4, fixed_abs, tag = 'smem constant byte address 0x4 - core index']
  #allocation1 [shape = 'u32[144,128]{1,0:T(1,128)}', space=vmem, size = 0x12000, scoped, tag = 'internal scratch']
  #allocation2 [shape = 'f32[8,128]{1,0:T(8,128)}', space=vmem, size = 0x1000, scoped, tag = 'scratch operand']
  #allocation3 [shape = 'f32[1,128]{1,0:T(1,128)}', space=vmem, size = 0x200, scoped, tag = 'scratch operand']
  #allocation4 [shape = 'f32[1,128]{1,0:T(1,128)}', space=vmem, size = 0x200, scoped, tag = 'scratch operand']
  #allocation5 [shape = 'f32[8,128]{1,0:T(8,128)}', space=vmem, size = 0x1000, scoped, tag = 'scratch operand']
  #allocation6 [shape = 's32[1]{0}', space=sflag, size = 0x4, scoped, tag = 'scoped memory for tpu_custom_call.1']
  #allocation7 [shape = 'u8[512]{0}', space=smem, size = 0x200, scoped, tag = 'prefetched SMEM operand 0']
  #allocation8 [shape = 'u8[512]{0}', space=smem, size = 0x200, scoped, tag = 'prefetched SMEM operand 1']
  %s0 = inlined_call_operand.vmem [shape: s32[3], index: 0, kind: input, shape index: {}]
  %s1 = inlined_call_operand.vmem [shape: s32[3], index: 1, kind: input, shape index: {}]
  %s2 = inlined_call_operand.vmem [shape: f32[2,4,256], index: 2, kind: input, shape index: {}]
  %s3 = inlined_call_operand.vmem [shape: f32[2,4,256], index: 3, kind: input, shape index: {}]
  %s4 = inlined_call_operand.vmem [shape: f32[8,4], index: 4, kind: input, shape index: {}]
  %s5 = inlined_call_operand.vmem [shape: f32[8,1], index: 5, kind: input, shape index: {}]
  %s6 = inlined_call_operand.vmem [shape: f32[16,4], index: 6, kind: input, shape index: {}]
  %s7 = inlined_call_operand.vmem [shape: f32[16,1], index: 7, kind: input, shape index: {}]
  %s8 = inlined_call_operand.hbm [shape: f32[2,8,256], index: 8, kind: output, shape index: {}]
  %s9 = sld [smem:[#allocation0]]
  $region69: #{tpu_custom_call.1} parent=0
    _
  %s11 = ssub.s32 1, %s9
  %s12 = scalar_select 0, %s11, %s9
  %s13 = sshll.u32 %s0, 4
  %s14 = int_to_ptr.vmem [resolvable:$true] %s13
  %16 = dma.vmem_to_smem %s14, 16, [#allocation7], [#allocation6]
  %s17 = sshll.u32 %s1, 4
  %s18 = int_to_ptr.vmem [resolvable:$true] %s17
  %20 = dma.vmem_to_smem %s18, 16, [#allocation8], [#allocation6]
  %21 = dma.done [#allocation6], 32
  %22 = sfence
  $region1: #{tpu_custom_call.1} parent=0
    #allocation9 [shape = 'u8[8192]{0}', space=vmem, size = 0x2000, scoped, tag = 'output window, operand 0']
    #allocation10 [shape = 's32[2]{0}', space=sflag, size = 0x8, scoped, tag = 'scoped memory for tpu_custom_call.1']
    %23 = vsyncpa [#allocation10], 0
    %s24 = scalar_lea.sflag [#allocation10], 1
    %25 = vsyncpa %s24, 0
    loop: start=0, step=1, limit=8
    $region2: #{tpu_custom_call.1} parent=1 // loop_pre_header
      _
    $region3: #{tpu_custom_call.1} parent=1 // loop_header
      %s27 = sphi 0, %s31
      %p28 = scmp.ge.s32.totalorder %s27, 8
      %s34 = sphi 0, %s46
      %s35 = sphi 0, %s42
      %s36 = sphi 0, %s34
      %s37 = sphi 0, %s35
      %s38 = sphi 0, %s36
      %s39 = sphi 0, %s37
      %s53 = sphi 0, %s55
      %s56 = sphi 0, %s53
      %s57 = sphi 0, %s56
      %s73 = sphi 0, %s57
      %s83 = sphi 0, %s85
      %s86 = sphi 0, %s83
      %s87 = sphi 0, %s86
      %s103 = sphi 0, %s87
      %s107 = sphi 0, %s107
      %s109 = sphi 0, %s107
      %s110 = sphi 0, %s109
      %s124 = sphi 0, %s110
      %s128 = sphi 0, %s128
      %s130 = sphi 0, %s128
      %s131 = sphi 0, %s130
      %s145 = sphi 0, %s131
      %s149 = sphi 0, %s149
      %s151 = sphi 0, %s149
      %s152 = sphi 0, %s151
      %s166 = sphi 0, %s152
      %s170 = sphi 0, %s170
      %s172 = sphi 0, %s170
      %s173 = sphi 0, %s172
      %s187 = sphi 0, %s173
      %s197 = sphi 0, %s199
      %s200 = sphi 0, %s197
      %s201 = sphi 0, %s200
      %s217 = sphi 0, %s201
    $region4: #{tpu_custom_call.1} parent=1 // loop_header_branch
      %30 = sbr.rel (%p28) target = $region8
    $region5: #{tpu_custom_call.1} parent=1 // loop_body
      %s32 = ssub.s32 %s27, 1
      %s33 = ssub.s32 %s27, 2
      %s40 = sadd.s32 1, %s35
      %p41 = scmp.ge.s32.totalorder %s40, 3
      %s42 = scalar_select %p41, 0, %s40
      %s43 = sadd.s32 1, %s34
      %s44 = scalar_select %p41, %s43, %s34
      %p45 = scmp.ge.s32.totalorder %s44, 2
      %s46 = scalar_select %p45, 0, %s44
      %s47 = sld [smem:[#allocation7 + %s35]]
      %s48 = sld [smem:[#allocation7 + %s42]]
      %s49 = ssub.s32 %s34, %s46
      %s50 = ssub.s32 %s47, %s48
      %s51 = sor.u32 %s49, %s50
      %p52 = scmp.eq.s32.totalorder %s51, 0
      %s54 = sadd.s32 %s53, 1
      %s55 = scalar_select %p52, %s53, %s54
      %p58 = pneg %p52
      %p59 = scmp.eq.s32.totalorder %s27, 5
      %p60 = por %p58, %p59
      %p61 = scmp.ne.s32.totalorder %s53, %s56
      %p62 = scmp.eq.s32.totalorder %s27, 0
      %p63 = por %p61, %p62
      %p64 = scmp.ne.s32.totalorder %s53, %s56
      %p65 = scmp.eq.s32.totalorder %s32, 5
      %p66 = por %p64, %p65
      %p67 = scmp.ne.s32.totalorder %s56, %s57
      %p68 = scmp.eq.s32.totalorder %s32, 0
      %p69 = por %p67, %p68
      %p70 = scmp.ne.s32.totalorder %s56, %s57
      %p71 = scmp.eq.s32.totalorder %s33, 5
      %p72 = por %p70, %p71
      %p74 = scmp.ne.s32.totalorder %s57, %s73
      %p75 = scmp.eq.s32.totalorder %s33, 0
      %p76 = por %p74, %p75
      %s77 = sld [smem:[#allocation8 + %s35]]
      %s78 = sld [smem:[#allocation8 + %s42]]
      %s79 = ssub.s32 %s34, %s46
      %s80 = ssub.s32 %s77, %s78
      %s81 = sor.u32 %s79, %s80
      %p82 = scmp.eq.s32.totalorder %s81, 0
      %s84 = sadd.s32 %s83, 1
      %s85 = scalar_select %p82, %s83, %s84
      %p88 = pneg %p82
      %p89 = scmp.eq.s32.totalorder %s27, 5
      %p90 = por %p88, %p89
      %p91 = scmp.ne.s32.totalorder %s83, %s86
      %p92 = scmp.eq.s32.totalorder %s27, 0
      %p93 = por %p91, %p92
      %p94 = scmp.ne.s32.totalorder %s83, %s86
      %p95 = scmp.eq.s32.totalorder %s32, 5
      %p96 = por %p94, %p95
      %p97 = scmp.ne.s32.totalorder %s86, %s87
      %p98 = scmp.eq.s32.totalorder %s32, 0
      %p99 = por %p97, %p98
      %p100 = scmp.ne.s32.totalorder %s86, %s87
      %p101 = scmp.eq.s32.totalorder %s33, 5
      %p102 = por %p100, %p101
      %p104 = scmp.ne.s32.totalorder %s87, %s103
      %p105 = scmp.eq.s32.totalorder %s33, 0
      %p106 = por %p104, %p105
      %s108 = sadd.s32 %s107, 1
      %p111 = scmp.eq.s32.totalorder %s27, 5
      %p112 = scmp.ne.s32.totalorder %s107, %s109
      %p113 = scmp.eq.s32.totalorder %s27, 0
      %p114 = por %p112, %p113
      %p115 = scmp.ne.s32.totalorder %s107, %s109
      %p116 = scmp.eq.s32.totalorder %s32, 5
      %p117 = por %p115, %p116
      %p118 = scmp.ne.s32.totalorder %s109, %s110
      %p119 = scmp.eq.s32.totalorder %s32, 0
      %p120 = por %p118, %p119
      %p121 = scmp.ne.s32.totalorder %s109, %s110
      %p122 = scmp.eq.s32.totalorder %s33, 5
      %p123 = por %p121, %p122
      %p125 = scmp.ne.s32.totalorder %s110, %s124
      %p126 = scmp.eq.s32.totalorder %s33, 0
      %p127 = por %p125, %p126
      %s129 = sadd.s32 %s128, 1
      %p132 = scmp.eq.s32.totalorder %s27, 5
      %p133 = scmp.ne.s32.totalorder %s128, %s130
      %p134 = scmp.eq.s32.totalorder %s27, 0
      %p135 = por %p133, %p134
      %p136 = scmp.ne.s32.totalorder %s128, %s130
      %p137 = scmp.eq.s32.totalorder %s32, 5
      %p138 = por %p136, %p137
      %p139 = scmp.ne.s32.totalorder %s130, %s131
      %p140 = scmp.eq.s32.totalorder %s32, 0
      %p141 = por %p139, %p140
      %p142 = scmp.ne.s32.totalorder %s130, %s131
      %p143 = scmp.eq.s32.totalorder %s33, 5
      %p144 = por %p142, %p143
      %p146 = scmp.ne.s32.totalorder %s131, %s145
      %p147 = scmp.eq.s32.totalorder %s33, 0
      %p148 = por %p146, %p147
      %s150 = sadd.s32 %s149, 1
      %p153 = scmp.eq.s32.totalorder %s27, 5
      %p154 = scmp.ne.s32.totalorder %s149, %s151
      %p155 = scmp.eq.s32.totalorder %s27, 0
      %p156 = por %p154, %p155
      %p157 = scmp.ne.s32.totalorder %s149, %s151
      %p158 = scmp.eq.s32.totalorder %s32, 5
      %p159 = por %p157, %p158
      %p160 = scmp.ne.s32.totalorder %s151, %s152
      %p161 = scmp.eq.s32.totalorder %s32, 0
      %p162 = por %p160, %p161
      %p163 = scmp.ne.s32.totalorder %s151, %s152
      %p164 = scmp.eq.s32.totalorder %s33, 5
      %p165 = por %p163, %p164
      %p167 = scmp.ne.s32.totalorder %s152, %s166
      %p168 = scmp.eq.s32.totalorder %s33, 0
      %p169 = por %p167, %p168
      %s171 = sadd.s32 %s170, 1
      %p174 = scmp.eq.s32.totalorder %s27, 5
      %p175 = scmp.ne.s32.totalorder %s170, %s172
      %p176 = scmp.eq.s32.totalorder %s27, 0
      %p177 = por %p175, %p176
      %p178 = scmp.ne.s32.totalorder %s170, %s172
      %p179 = scmp.eq.s32.totalorder %s32, 5
      %p180 = por %p178, %p179
      %p181 = scmp.ne.s32.totalorder %s172, %s173
      %p182 = scmp.eq.s32.totalorder %s32, 0
      %p183 = por %p181, %p182
      %p184 = scmp.ne.s32.totalorder %s172, %s173
      %p185 = scmp.eq.s32.totalorder %s33, 5
      %p186 = por %p184, %p185
      %p188 = scmp.ne.s32.totalorder %s173, %s187
      %p189 = scmp.eq.s32.totalorder %s33, 0
      %p190 = por %p188, %p189
      %s191 = sld [smem:[#allocation7 + %s35]]
      %s192 = sld [smem:[#allocation7 + %s42]]
      %s193 = ssub.s32 %s34, %s46
      %s194 = ssub.s32 %s191, %s192
      %s195 = sor.u32 %s193, %s194
      %p196 = scmp.eq.s32.totalorder %s195, 0
      %s198 = sadd.s32 %s197, 1
      %s199 = scalar_select %p196, %s197, %s198
      %p202 = pneg %p196
      %p203 = scmp.eq.s32.totalorder %s27, 5
      %p204 = por %p202, %p203
      %p205 = scmp.ne.s32.totalorder %s197, %s200
      %p206 = scmp.eq.s32.totalorder %s27, 0
      %p207 = por %p205, %p206
      %p208 = scmp.ne.s32.totalorder %s197, %s200
      %p209 = scmp.eq.s32.totalorder %s32, 5
      %p210 = por %p208, %p209
      %p211 = scmp.ne.s32.totalorder %s200, %s201
      %p212 = scmp.eq.s32.totalorder %s32, 0
      %p213 = por %p211, %p212
      %p214 = scmp.ne.s32.totalorder %s200, %s201
      %p215 = scmp.eq.s32.totalorder %s33, 5
      %p216 = por %p214, %p215
      %p218 = scmp.ne.s32.totalorder %s201, %s217
      %p219 = scmp.eq.s32.totalorder %s33, 0
      %p220 = por %p218, %p219
      %p221 = scmp.le.s32.totalorder 1, %s27
      %p222 = scmp.lt.s32.totalorder %s27, 7
      %p223 = pnand %p221, %p222
      %p224 = pneg %p223
      // Predicated region
      $region9: #{tpu_custom_call.1} parent=5 // pred_check
        _
      $region10: #{tpu_custom_call.1} parent=5 // pred_check_branch
        %226 = sbr.rel (%p223) target = $region12
      $region11: #{tpu_custom_call.1} parent=5 // pred_region
        %s227 = ssub.s32 %s27, 1
        // Predicated region
        $region13: #{tpu_custom_call.1} parent=11 // pred_check
          %p228 = pneg %p120
        $region14: #{tpu_custom_call.1} parent=11 // pred_check_branch
          %230 = sbr.rel (%p228) target = $region16
        $region15: #{tpu_custom_call.1} parent=11 // pred_region
          _
        $region16: #{tpu_custom_call.1} parent=11 // pred_fallthru
          _
        // Predicated region
        $region17: #{tpu_custom_call.1} parent=11 // pred_check
          %p231 = pneg %p141
        $region18: #{tpu_custom_call.1} parent=11 // pred_check_branch
          %233 = sbr.rel (%p231) target = $region20
        $region19: #{tpu_custom_call.1} parent=11 // pred_region
          _
        $region20: #{tpu_custom_call.1} parent=11 // pred_fallthru
          _
        // Predicated region
        $region21: #{tpu_custom_call.1} parent=11 // pred_check
          %p234 = pneg %p162
        $region22: #{tpu_custom_call.1} parent=11 // pred_check_branch
          %236 = sbr.rel (%p234) target = $region24
        $region23: #{tpu_custom_call.1} parent=11 // pred_region
          _
        $region24: #{tpu_custom_call.1} parent=11 // pred_fallthru
          _
        // Predicated region
        $region25: #{tpu_custom_call.1} parent=11 // pred_check
          %p237 = pneg %p183
        $region26: #{tpu_custom_call.1} parent=11 // pred_check_branch
          %239 = sbr.rel (%p237) target = $region28
        $region27: #{tpu_custom_call.1} parent=11 // pred_region
          _
        $region28: #{tpu_custom_call.1} parent=11 // pred_fallthru
          _
      $region12: #{tpu_custom_call.1} parent=5 // pred_fallthru
        _
      %p240 = scmp.lt.s32.totalorder %s27, 6
      // Predicated region
      $region29: #{tpu_custom_call.1} parent=5 // pred_check
        %p241 = pneg %p240
      $region30: #{tpu_custom_call.1} parent=5 // pred_check_branch
        %243 = sbr.rel (%p241) target = $region32
      $region31: #{tpu_custom_call.1} parent=5 // pred_region
        // Predicated region
        $region33: #{tpu_custom_call.1} parent=31 // pred_check
          %p244 = pneg %p63
        $region34: #{tpu_custom_call.1} parent=31 // pred_check_branch
          %246 = sbr.rel (%p244) target = $region36
        $region35: #{tpu_custom_call.1} parent=31 // pred_region
          %s247 = sld [smem:[#allocation7 + %s35]]
          %p248 = scmp.lt.s32.totalorder %s34, 1
          %s249 = scalar_select %p248, %s34, 1
          %p250 = scmp.lt.s32.totalorder %s247, 1
          %s251 = scalar_select %p250, %s247, 1
          %s252 = smul.addr %s249, 2
          %s253 = sadd.s32 %s251, %s252
          %s254 = smul.addr %s253, 4
          %s255 = scalar_lea.vmem %s2, %s254
          %s256 = sld [smem:[#allocation7 + %s35]]
        $region36: #{tpu_custom_call.1} parent=31 // pred_fallthru
          _
        // Predicated region
        $region37: #{tpu_custom_call.1} parent=31 // pred_check
          %p257 = pneg %p93
        $region38: #{tpu_custom_call.1} parent=31 // pred_check_branch
          %259 = sbr.rel (%p257) target = $region40
        $region39: #{tpu_custom_call.1} parent=31 // pred_region
          %s260 = sld [smem:[#allocation8 + %s35]]
          %p261 = scmp.lt.s32.totalorder %s34, 1
          %s262 = scalar_select %p261, %s34, 1
          %p263 = scmp.lt.s32.totalorder %s260, 1
          %s264 = scalar_select %p263, %s260, 1
          %s265 = smul.addr %s262, 2
          %s266 = sadd.s32 %s264, %s265
          %s267 = smul.addr %s266, 4
          %s268 = scalar_lea.vmem %s3, %s267
          %s269 = sld [smem:[#allocation8 + %s35]]
        $region40: #{tpu_custom_call.1} parent=31 // pred_fallthru
          _
      $region32: #{tpu_custom_call.1} parent=5 // pred_fallthru
        _
      %p270 = scmp.le.s32.totalorder 1, %s27
      %p271 = scmp.lt.s32.totalorder %s27, 7
      %p272 = pnand %p270, %p271
      %p273 = pneg %p272
      // Predicated region
      $region41: #{tpu_custom_call.1} parent=5 // pred_check
        _
      $region42: #{tpu_custom_call.1} parent=5 // pred_check_branch
        %275 = sbr.rel (%p272) target = $region44
      $region43: #{tpu_custom_call.1} parent=5 // pred_region
        %s276 = ssub.s32 %s27, 1
        %s277 = sld [smem:[#allocation7 + %s37]]
        %p278 = scmp.lt.s32.totalorder %s36, 1
        %s279 = scalar_select %p278, %s36, 1
        %p280 = scmp.lt.s32.totalorder %s277, 1
        %s281 = scalar_select %p280, %s277, 1
        %s282 = smul.addr %s279, 2
        %s283 = sadd.s32 %s281, %s282
        %s284 = smul.addr %s283, 4
        %s285 = scalar_lea.vmem %s2, %s284
        %p286 = pneg %p69
        %p287 = pneg %p66
        %s288 = sld [smem:[#allocation8 + %s37]]
        %p289 = scmp.lt.s32.totalorder %s36, 1
        %s290 = scalar_select %p289, %s36, 1
        %p291 = scmp.lt.s32.totalorder %s288, 1
        %s292 = scalar_select %p291, %s288, 1
        %s293 = smul.addr %s290, 2
        %s294 = sadd.s32 %s292, %s293
        %s295 = smul.addr %s294, 4
        %s296 = scalar_lea.vmem %s3, %s295
        %p297 = pneg %p99
        %p298 = pneg %p96
        %p299 = pneg %p120
        %p300 = pneg %p117
        %p301 = pneg %p141
        %p302 = pneg %p138
        %p303 = pneg %p162
        %p304 = pneg %p159
        %p305 = pneg %p183
        %p306 = pneg %p180
        %p307 = pneg %p213
        %p308 = pneg %p210
        %s309 = sand.u32 %s200, 1
        %s310 = scalar_lea.sflag [#allocation10], %s309
        %s311 = sand.u32 %s200, 1
        %s312 = smul.addr %s311, 8
        %s313 = scalar_lea.vmem [#allocation9], %s312
        %s314 = sld [smem:[#allocation7 + %s37]]
        %p315 = scmp.lt.s32.totalorder %s36, 1
        %s316 = scalar_select %p315, %s36, 1
        %p317 = scmp.lt.s32.totalorder %s314, 1
        %s318 = scalar_select %p317, %s314, 1
        %s319 = smul.addr %s316, 2
        %s320 = sadd.s32 %s318, %s319
        %s321 = smul.addr %s320, 4
        %s322 = scalar_lea.vmem %s2, %s321
        %s323 = sld [smem:[#allocation7 + %s37]]
        %s324 = sld [smem:[#allocation8 + %s37]]
        %p325 = scmp.lt.s32.totalorder %s36, 1
        %s326 = scalar_select %p325, %s36, 1
        %p327 = scmp.lt.s32.totalorder %s324, 1
        %s328 = scalar_select %p327, %s324, 1
        %s329 = smul.addr %s326, 2
        %s330 = sadd.s32 %s328, %s329
        %s331 = smul.addr %s330, 4
        %s332 = scalar_lea.vmem %s3, %s331
        %s333 = sld [smem:[#allocation8 + %s37]]
        %s334 = sld [smem:[#allocation7 + %s37]]
        %s335 = sld [smem:[#allocation7 + %s37]]
        %s336 = sld [smem:[#allocation8 + %s37]]
        %p337 = scmp.eq.s32.totalorder %s336, 0
        // Predicated region
        $region45: #{tpu_custom_call.1} parent=43 // pred_check
          %p338 = pneg %p337
        $region46: #{tpu_custom_call.1} parent=43 // pred_check_branch
          %340 = sbr.rel (%p338) target = $region48
        $region47: #{tpu_custom_call.1} parent=43 // pred_region
          %v341 = vld [vmem:[%s4] sm:$0xff]
          %v342 = vld [vmem:[%s322] sm:$0xf]
          %v343 = vld [vmem:[%s5] sm:$0xff]
          %345 = vset.pattern.permute.xlu0 0
          %346 = vperm.xlu0 %345, %v343
          %v347 = vpop.permute.xlu0 %346
          %vm349 = vcmask 31744
          %v351 = vsel %vm349, %v341, 0
          %vm353 = vcmask 1043456
          %v355 = vsel %vm353, %v342, 0
          %357 = vmatprep.subr.mxu0 0.0
          %358 = vmatpush1.msra.mxu0 %v355
          %359 = vmatprep.subr.mxu0 0.0
          %360 = vmatpush1.msra.mxu0 0.0
          %361 = vmatprep.subr.mxu0 0.0
          %362 = vmatpush1.msra.mxu0 0.0
          %363 = vmatprep.subr.mxu0 0.0
          %364 = vmatpush1.msra.mxu0 0.0
          %365 = vmatprep.subr.mxu0 0.0
          %366 = vmatpush1.msra.mxu0 0.0
          %367 = vmatprep.subr.mxu0 0.0
          %368 = vmatpush1.msra.mxu0 0.0
          %369 = vmatprep.subr.mxu0 0.0
          %370 = vmatpush1.msra.mxu0 0.0
          %371 = vmatprep.subr.mxu0 0.0
          %372 = vmatpush1.msra.mxu0 0.0
          %373 = vmatprep.subr.mxu0 0.0
          %374 = vmatpush1.msra.mxu0 0.0
          %375 = vmatprep.subr.mxu0 0.0
          %376 = vmatpush1.msra.mxu0 0.0
          %377 = vmatprep.subr.mxu0 0.0
          %378 = vmatpush1.msra.mxu0 0.0
          %379 = vmatprep.subr.mxu0 0.0
          %380 = vmatpush1.msra.mxu0 0.0
          %381 = vmatprep.subr.mxu0 0.0
          %382 = vmatpush1.msra.mxu0 0.0
          %383 = vmatprep.subr.mxu0 0.0
          %384 = vmatpush1.msra.mxu0 0.0
          %385 = vmatprep.subr.mxu0 0.0
          %386 = vmatpush1.msra.mxu0 0.0
          %387 = vmatprep.subr.mxu0 0.0
          %388 = vmatpush1.msra.mxu0 0.0
          %389 = vmatprep.subr.mxu0 0.0
          %390 = vmatpush1.msra.mxu0 0.0
          %391 = vmatprep.subr.mxu0 0.0
          %392 = vmatpush1.msra.mxu0 0.0
          %393 = vmatprep.subr.mxu0 0.0
          %394 = vmatpush1.msra.mxu0 0.0
          %395 = vmatprep.subr.mxu0 0.0
          %396 = vmatpush1.msra.mxu0 0.0
          %397 = vmatprep.subr.mxu0 0.0
          %398 = vmatpush1.msra.mxu0 0.0
          %399 = vmatprep.subr.mxu0 0.0
          %400 = vmatpush1.msra.mxu0 0.0
          %401 = vmatprep.subr.mxu0 0.0
          %402 = vmatpush1.msra.mxu0 0.0
          %403 = vmatprep.subr.mxu0 0.0
          %404 = vmatpush1.msra.mxu0 0.0
          %405 = vmatprep.subr.mxu0 0.0
          %406 = vmatpush1.msra.mxu0 0.0
          %407 = vmatprep.subr.mxu0 0.0
          %408 = vmatpush1.msra.mxu0 0.0
          %409 = vmatprep.subr.mxu0 0.0
          %410 = vmatpush1.msra.mxu0 0.0
          %411 = vmatprep.subr.mxu0 0.0
          %412 = vmatpush1.msra.mxu0 0.0
          %413 = vmatprep.subr.mxu0 0.0
          %414 = vmatpush1.msra.mxu0 0.0
          %415 = vmatprep.subr.mxu0 0.0
          %416 = vmatpush1.msra.mxu0 0.0
          %417 = vmatprep.subr.mxu0 0.0
          %418 = vmatpush1.msra.mxu0 0.0
          %419 = vmatprep.subr.mxu0 0.0
          %420 = vmatpush1.msra.mxu0 0.0
          %421 = vmatprep.mubr.f32.mxu0 0.0
          %422 = vmatmul.mubr.f32.gmra.mrb[0].mxu0 %v351
          %v423 = vpop.f32.mrb[0].mxu0
          %v424 = vadd.f32 %v347, %v423
          %v425 = vpop.f32.mrb[0].mxu0
          %426 = vdwg.mxu0
          %v427 = vmul.f32 %v424, 0.35355338
          %428 = vst [vmem:[#allocation2] sm:$0xff] %v427
          %429 = vst [vmem:[#allocation3] sm:$0x1] -1e+30
          %430 = vst [vmem:[#allocation4] sm:$0x1] 0.0
          %431 = vst [vmem:[#allocation5] sm:$0xff] 0.0
        $region48: #{tpu_custom_call.1} parent=43 // pred_fallthru
          _
        %p432 = scmp.ne.s32.totalorder %s336, %s335
        // Predicated region
        $region49: #{tpu_custom_call.1} parent=43 // pred_check
          %p433 = pneg %p432
        $region50: #{tpu_custom_call.1} parent=43 // pred_check_branch
          %435 = sbr.rel (%p433) target = $region52
        $region51: #{tpu_custom_call.1} parent=43 // pred_region
          %v436 = vld [vmem:[%s6] sm:$0xff]
          %v437 = vld [vmem:[%s6 + $0x8] sm:$0xff]
          %v438 = vld [vmem:[%s332] sm:$0xf]
          %v439 = vld [vmem:[%s7] sm:$0xff]
          %v440 = vld [vmem:[%s7 + $0x8] sm:$0xff]
          %442 = vset.pattern.permute.xlu0 0
          %443 = vperm.xlu0 %442, %v439
          %v444 = vpop.permute.xlu0 %443
          %447 = vset.pattern.permute.xlu0 0
          %448 = vperm.xlu0 %447, %v440
          %v449 = vpop.permute.xlu0 %448
          %vm451 = vcmask 31744
          %v453 = vsel %vm451, %v436, 0
          %v456 = vsel %vm451, %v437, 0
          %vm458 = vcmask 1043456
          %v460 = vsel %vm458, %v438, 0
          %462 = vmatprep.subr.mxu0 0.0
          %463 = vmatpush1.msra.mxu0 %v460
          %464 = vmatprep.subr.mxu0 0.0
          %465 = vmatpush1.msra.mxu0 0.0
          %466 = vmatprep.subr.mxu0 0.0
          %467 = vmatpush1.msra.mxu0 0.0
          %468 = vmatprep.subr.mxu0 0.0
          %469 = vmatpush1.msra.mxu0 0.0
          %470 = vmatprep.subr.mxu0 0.0
          %471 = vmatpush1.msra.mxu0 0.0
          %472 = vmatprep.subr.mxu0 0.0
          %473 = vmatpush1.msra.mxu0 0.0
          %474 = vmatprep.subr.mxu0 0.0
          %475 = vmatpush1.msra.mxu0 0.0
          %476 = vmatprep.subr.mxu0 0.0
          %477 = vmatpush1.msra.mxu0 0.0
          %478 = vmatprep.subr.mxu0 0.0
          %479 = vmatpush1.msra.mxu0 0.0
          %480 = vmatprep.subr.mxu0 0.0
          %481 = vmatpush1.msra.mxu0 0.0
          %482 = vmatprep.subr.mxu0 0.0
          %483 = vmatpush1.msra.mxu0 0.0
          %484 = vmatprep.subr.mxu0 0.0
          %485 = vmatpush1.msra.mxu0 0.0
          %486 = vmatprep.subr.mxu0 0.0
          %487 = vmatpush1.msra.mxu0 0.0
          %488 = vmatprep.subr.mxu0 0.0
          %489 = vmatpush1.msra.mxu0 0.0
          %490 = vmatprep.subr.mxu0 0.0
          %491 = vmatpush1.msra.mxu0 0.0
          %492 = vmatprep.subr.mxu0 0.0
          %493 = vmatpush1.msra.mxu0 0.0
          %494 = vmatprep.subr.mxu0 0.0
          %495 = vmatpush1.msra.mxu0 0.0
          %496 = vmatprep.subr.mxu0 0.0
          %497 = vmatpush1.msra.mxu0 0.0
          %498 = vmatprep.subr.mxu0 0.0
          %499 = vmatpush1.msra.mxu0 0.0
          %500 = vmatprep.subr.mxu0 0.0
          %501 = vmatpush1.msra.mxu0 0.0
          %502 = vmatprep.subr.mxu0 0.0
          %503 = vmatpush1.msra.mxu0 0.0
          %504 = vmatprep.subr.mxu0 0.0
          %505 = vmatpush1.msra.mxu0 0.0
          %506 = vmatprep.subr.mxu0 0.0
          %507 = vmatpush1.msra.mxu0 0.0
          %508 = vmatprep.subr.mxu0 0.0
          %509 = vmatpush1.msra.mxu0 0.0
          %510 = vmatprep.subr.mxu0 0.0
          %511 = vmatpush1.msra.mxu0 0.0
          %512 = vmatprep.subr.mxu0 0.0
          %513 = vmatpush1.msra.mxu0 0.0
          %514 = vmatprep.subr.mxu0 0.0
          %515 = vmatpush1.msra.mxu0 0.0
          %516 = vmatprep.subr.mxu0 0.0
          %517 = vmatpush1.msra.mxu0 0.0
          %518 = vmatprep.subr.mxu0 0.0
          %519 = vmatpush1.msra.mxu0 0.0
          %520 = vmatprep.subr.mxu0 0.0
          %521 = vmatpush1.msra.mxu0 0.0
          %522 = vmatprep.subr.mxu0 0.0
          %523 = vmatpush1.msra.mxu0 0.0
          %524 = vmatprep.subr.mxu0 0.0
          %525 = vmatpush1.msra.mxu0 0.0
          %526 = vmatprep.mubr.f32.mxu0 0.0
          %527 = vmatmul.mubr.f32.gmra.mrb[0].mxu0 %v453
          %v528 = vpop.f32.mrb[0].mxu0
          %v529 = vadd.f32 %v444, %v528
          %v530 = vpop.f32.mrb[0].mxu0
          %531 = vmatprep.mubr.f32.mxu0 0.0
          %532 = vmatmul.mubr.f32.gmra.mrb[0].mxu0 %v456
          %v533 = vpop.f32.mrb[0].mxu0
          %v534 = vadd.f32 %v449, %v533
          %v535 = vpop.f32.mrb[0].mxu0
          %536 = vdwg.mxu0
          %v537 = vld [vmem:[#allocation2] sm:$0xff]
          %538 = vxpose.xlu0.b32.start [1/16] %v529, 128
          %539 = vxpose.xlu0.b32.cont [2/16] 0.0, 128
          %540 = vxpose.xlu0.b32.cont [3/16] 0.0, 128
          %541 = vxpose.xlu0.b32.cont [4/16] 0.0, 128
          %542 = vxpose.xlu0.b32.cont [5/16] 0.0, 128
          %543 = vxpose.xlu0.b32.cont [6/16] 0.0, 128
          %544 = vxpose.xlu0.b32.cont [7/16] 0.0, 128
          %545 = vxpose.xlu0.b32.cont [8/16] 0.0, 128
          %546 = vxpose.xlu0.b32.cont [9/16] 0.0, 128
          %547 = vxpose.xlu0.b32.cont [10/16] 0.0, 128
          %548 = vxpose.xlu0.b32.cont [11/16] 0.0, 128
          %549 = vxpose.xlu0.b32.cont [12/16] 0.0, 128
          %550 = vxpose.xlu0.b32.cont [13/16] 0.0, 128
          %551 = vxpose.xlu0.b32.cont [14/16] 0.0, 128
          %552 = vxpose.xlu0.b32.cont [15/16] 0.0, 128
          %553 = vxpose.xlu0.b32.end [16/16] 0.0, 128
          %v554 = vpop.trf.xlu0
          %v555 = vpop.trf.xlu0
          %v556 = vpop.trf.xlu0
          %v557 = vpop.trf.xlu0
          %v558 = vpop.trf.xlu0
          %v559 = vpop.trf.xlu0
          %v560 = vpop.trf.xlu0
          %v561 = vpop.trf.xlu0
          %v562 = vpop.trf.xlu0
          %v563 = vpop.trf.xlu0
          %v564 = vpop.trf.xlu0
          %v565 = vpop.trf.xlu0
          %v566 = vpop.trf.xlu0
          %v567 = vpop.trf.xlu0
          %v568 = vpop.trf.xlu0
          %v569 = vpop.trf.xlu0
          %vm570 = vcmask 64512
          %v572 = vsel %vm570, %v554, 0
          %v575 = vsel %vm570, %v555, 0
          %v578 = vsel %vm570, %v556, 0
          %v581 = vsel %vm570, %v557, 0
          %v584 = vsel %vm570, %v558, 0
          %v587 = vsel %vm570, %v559, 0
          %v590 = vsel %vm570, %v560, 0
          %v593 = vsel %vm570, %v561, 0
          %v596 = vsel %vm570, %v562, 0
          %v599 = vsel %vm570, %v563, 0
          %v602 = vsel %vm570, %v564, 0
          %v605 = vsel %vm570, %v565, 0
          %v608 = vsel %vm570, %v566, 0
          %v611 = vsel %vm570, %v567, 0
          %v614 = vsel %vm570, %v568, 0
          %v617 = vsel %vm570, %v569, 0
          %619 = vmatprep.subr.mxu0 0.0
          %620 = vmatpush1.msra.mxu0 %v537
          %621 = vmatprep.subr.mxu0 0.0
          %622 = vmatpush1.msra.mxu0 0.0
          %623 = vmatprep.subr.mxu0 0.0
          %624 = vmatpush1.msra.mxu0 0.0
          %625 = vmatprep.subr.mxu0 0.0
          %626 = vmatpush1.msra.mxu0 0.0
          %627 = vmatprep.subr.mxu0 0.0
          %628 = vmatpush1.msra.mxu0 0.0
          %629 = vmatprep.subr.mxu0 0.0
          %630 = vmatpush1.msra.mxu0 0.0
          %631 = vmatprep.subr.mxu0 0.0
          %632 = vmatpush1.msra.mxu0 0.0
          %633 = vmatprep.subr.mxu0 0.0
          %634 = vmatpush1.msra.mxu0 0.0
          %635 = vmatprep.subr.mxu0 0.0
          %636 = vmatpush1.msra.mxu0 0.0
          %637 = vmatprep.subr.mxu0 0.0
          %638 = vmatpush1.msra.mxu0 0.0
          %639 = vmatprep.subr.mxu0 0.0
          %640 = vmatpush1.msra.mxu0 0.0
          %641 = vmatprep.subr.mxu0 0.0
          %642 = vmatpush1.msra.mxu0 0.0
          %643 = vmatprep.subr.mxu0 0.0
          %644 = vmatpush1.msra.mxu0 0.0
          %645 = vmatprep.subr.mxu0 0.0
          %646 = vmatpush1.msra.mxu0 0.0
          %647 = vmatprep.subr.mxu0 0.0
          %648 = vmatpush1.msra.mxu0 0.0
          %649 = vmatprep.subr.mxu0 0.0
          %650 = vmatpush1.msra.mxu0 0.0
          %651 = vmatprep.subr.mxu0 0.0
          %652 = vmatpush1.msra.mxu0 0.0
          %653 = vmatprep.subr.mxu0 0.0
          %654 = vmatpush1.msra.mxu0 0.0
          %655 = vmatprep.subr.mxu0 0.0
          %656 = vmatpush1.msra.mxu0 0.0
          %657 = vmatprep.subr.mxu0 0.0
          %658 = vmatpush1.msra.mxu0 0.0
          %659 = vmatprep.subr.mxu0 0.0
          %660 = vmatpush1.msra.mxu0 0.0
          %661 = vmatprep.subr.mxu0 0.0
          %662 = vmatpush1.msra.mxu0 0.0
          %663 = vmatprep.subr.mxu0 0.0
          %664 = vmatpush1.msra.mxu0 0.0
          %665 = vmatprep.subr.mxu0 0.0
          %666 = vmatpush1.msra.mxu0 0.0
          %667 = vmatprep.subr.mxu0 0.0
          %668 = vmatpush1.msra.mxu0 0.0
          %669 = vmatprep.subr.mxu0 0.0
          %670 = vmatpush1.msra.mxu0 0.0
          %671 = vmatprep.subr.mxu0 0.0
          %672 = vmatpush1.msra.mxu0 0.0
          %673 = vmatprep.subr.mxu0 0.0
          %674 = vmatpush1.msra.mxu0 0.0
          %675 = vmatprep.subr.mxu0 0.0
          %676 = vmatpush1.msra.mxu0 0.0
          %677 = vmatprep.subr.mxu0 0.0
          %678 = vmatpush1.msra.mxu0 0.0
          %679 = vmatprep.subr.mxu0 0.0
          %680 = vmatpush1.msra.mxu0 0.0
          %681 = vmatprep.subr.mxu0 0.0
          %682 = vmatpush1.msra.mxu0 0.0
          %683 = vmatprep.mubr.f32.mxu0 0.0
          %684 = vmatmul.mubr.f32.gmra.mrb[0].mxu0 %v572
          %v685 = vpop.f32.mrb[0].mxu0
          %v686 = vadd.f32 0.0, %v685
          %v687 = vpop.f32.mrb[0].mxu0
          %688 = vmatprep.mubr.f32.mxu0 0.0
          %689 = vmatmul.mubr.f32.gmra.mrb[0].mxu0 %v575
          %v690 = vpop.f32.mrb[0].mxu0
          %v691 = vadd.f32 0.0, %v690
          %v692 = vpop.f32.mrb[0].mxu0
          %693 = vmatprep.mubr.f32.mxu0 0.0
          %694 = vmatmul.mubr.f32.gmra.mrb[0].mxu0 %v578
          %v695 = vpop.f32.mrb[0].mxu0
          %v696 = vadd.f32 0.0, %v695
          %v697 = vpop.f32.mrb[0].mxu0
          %698 = vmatprep.mubr.f32.mxu0 0.0
          %699 = vmatmul.mubr.f32.gmra.mrb[0].mxu0 %v581
          %v700 = vpop.f32.mrb[0].mxu0
          %v701 = vadd.f32 0.0, %v700
          %v702 = vpop.f32.mrb[0].mxu0
          %703 = vmatprep.mubr.f32.mxu0 0.0
          %704 = vmatmul.mubr.f32.gmra.mrb[0].mxu0 %v584
          %v705 = vpop.f32.mrb[0].mxu0
          %v706 = vadd.f32 0.0, %v705
          %v707 = vpop.f32.mrb[0].mxu0
          %708 = vmatprep.mubr.f32.mxu0 0.0
          %709 = vmatmul.mubr.f32.gmra.mrb[0].mxu0 %v587
          %v710 = vpop.f32.mrb[0].mxu0
          %v711 = vadd.f32 0.0, %v710
          %v712 = vpop.f32.mrb[0].mxu0
          %713 = vmatprep.mubr.f32.mxu0 0.0
          %714 = vmatmul.mubr.f32.gmra.mrb[0].mxu0 %v590
          %v715 = vpop.f32.mrb[0].mxu0
          %v716 = vadd.f32 0.0, %v715
          %v717 = vpop.f32.mrb[0].mxu0
          %718 = vmatprep.mubr.f32.mxu0 0.0
          %719 = vmatmul.mubr.f32.gmra.mrb[0].mxu0 %v593
          %v720 = vpop.f32.mrb[0].mxu0
          %v721 = vadd.f32 0.0, %v720
          %v722 = vpop.f32.mrb[0].mxu0
          %723 = vmatprep.mubr.f32.mxu0 0.0
          %724 = vmatmul.mubr.f32.gmra.mrb[0].mxu0 %v596
          %v725 = vpop.f32.mrb[0].mxu0
          %v726 = vadd.f32 0.0, %v725
          %v727 = vpop.f32.mrb[0].mxu0
          %728 = vmatprep.mubr.f32.mxu0 0.0
          %729 = vmatmul.mubr.f32.gmra.mrb[0].mxu0 %v599
          %v730 = vpop.f32.mrb[0].mxu0
          %v731 = vadd.f32 0.0, %v730
          %v732 = vpop.f32.mrb[0].mxu0
          %733 = vmatprep.mubr.f32.mxu0 0.0
          %734 = vmatmul.mubr.f32.gmra.mrb[0].mxu0 %v602
          %v735 = vpop.f32.mrb[0].mxu0
          %v736 = vadd.f32 0.0, %v735
          %v737 = vpop.f32.mrb[0].mxu0
          %738 = vmatprep.mubr.f32.mxu0 0.0
          %739 = vmatmul.mubr.f32.gmra.mrb[0].mxu0 %v605
          %v740 = vpop.f32.mrb[0].mxu0
          %v741 = vadd.f32 0.0, %v740
          %v742 = vpop.f32.mrb[0].mxu0
          %743 = vmatprep.mubr.f32.mxu0 0.0
          %744 = vmatmul.mubr.f32.gmra.mrb[0].mxu0 %v608
          %v745 = vpop.f32.mrb[0].mxu0
          %v746 = vadd.f32 0.0, %v745
          %v747 = vpop.f32.mrb[0].mxu0
          %748 = vmatprep.mubr.f32.mxu0 0.0
          %749 = vmatmul.mubr.f32.gmra.mrb[0].mxu0 %v611
          %v750 = vpop.f32.mrb[0].mxu0
          %v751 = vadd.f32 0.0, %v750
          %v752 = vpop.f32.mrb[0].mxu0
          %753 = vmatprep.mubr.f32.mxu0 0.0
          %754 = vmatmul.mubr.f32.gmra.mrb[0].mxu0 %v614
          %v755 = vpop.f32.mrb[0].mxu0
          %v756 = vadd.f32 0.0, %v755
          %v757 = vpop.f32.mrb[0].mxu0
          %758 = vmatprep.mubr.f32.mxu0 0.0
          %759 = vmatmul.mubr.f32.gmra.mrb[0].mxu0 %v617
          %v760 = vpop.f32.mrb[0].mxu0
          %v761 = vadd.f32 0.0, %v760
          %v762 = vpop.f32.mrb[0].mxu0
          %763 = vdwg.mxu0
          %v764 = vld [vmem:[#allocation3] sm:$0x1]
          %v765 = vmax.f32 %v686, %v706
          %v766 = vmax.f32 %v691, %v711
          %v767 = vmax.f32 %v696, %v716
          %v768 = vmax.f32 %v701, %v721
          %v769 = vmax.f32 %v765, %v726
          %v770 = vmax.f32 %v766, %v731
          %v771 = vmax.f32 %v767, %v736
          %v772 = vmax.f32 %v768, %v741
          %v773 = vmax.f32 %v769, %v746
          %v774 = vmax.f32 %v770, %v751
          %v775 = vmax.f32 %v771, %v756
          %v776 = vmax.f32 %v772, %v761
          %v777 = vmax.f32 %v773, %v774
          %v778 = vmax.f32 %v775, %v776
          %v779 = vmax.f32 %v777, %v778
          %v780 = vrot.slane %v779, 4
          %v781 = vmax.f32 %v779, %v780
          %v782 = vrot.slane %v781, 2
          %v783 = vmax.f32 %v781, %v782
          %v784 = vrot.slane %v783, 1
          %v785 = vmax.f32 %v783, %v784
          %v786 = vmax.f32 %v764, %v785
          %v787 = vsub.f32 %v764, %v786
          %v788 = vmul.f32 %v787, 1.442695
          %v789 = vpow.pop %v788
          %v791 = vlaneseq
          %v792 = vshrl.u32 %v791, 7
          %v793 = vsub.s32 0, %v792
          %v794 = vrot.slane %v786, %v793
          %v796 = vsub.f32 %v686, %v794
          %v797 = vsub.f32 %v691, %v794
          %v798 = vsub.f32 %v696, %v794
          %v799 = vsub.f32 %v701, %v794
          %v800 = vsub.f32 %v706, %v794
          %v801 = vsub.f32 %v711, %v794
          %v802 = vsub.f32 %v716, %v794
          %v803 = vsub.f32 %v721, %v794
          %v804 = vsub.f32 %v726, %v794
          %v805 = vsub.f32 %v731, %v794
          %v806 = vsub.f32 %v736, %v794
          %v807 = vsub.f32 %v741, %v794
          %v808 = vsub.f32 %v746, %v794
          %v809 = vsub.f32 %v751, %v794
          %v810 = vsub.f32 %v756, %v794
          %v811 = vsub.f32 %v761, %v794
          %v812 = vmul.f32 %v796, 1.442695
          %v813 = vpow.pop %v812
          %v814 = vmul.f32 %v797, 1.442695
          %v815 = vpow.pop %v814
          %v816 = vmul.f32 %v798, 1.442695
          %v817 = vpow.pop %v816
          %v818 = vmul.f32 %v799, 1.442695
          %v819 = vpow.pop %v818
          %v820 = vmul.f32 %v800, 1.442695
          %v821 = vpow.pop %v820
          %v822 = vmul.f32 %v801, 1.442695
          %v823 = vpow.pop %v822
          %v824 = vmul.f32 %v802, 1.442695
          %v825 = vpow.pop %v824
          %v826 = vmul.f32 %v803, 1.442695
          %v827 = vpow.pop %v826
          %v828 = vmul.f32 %v804, 1.442695
          %v829 = vpow.pop %v828
          %v830 = vmul.f32 %v805, 1.442695
          %v831 = vpow.pop %v830
          %v832 = vmul.f32 %v806, 1.442695
          %v833 = vpow.pop %v832
          %v834 = vmul.f32 %v807, 1.442695
          %v835 = vpow.pop %v834
          %v836 = vmul.f32 %v808, 1.442695
          %v837 = vpow.pop %v836
          %v838 = vmul.f32 %v809, 1.442695
          %v839 = vpow.pop %v838
          %v840 = vmul.f32 %v810, 1.442695
          %v841 = vpow.pop %v840
          %v842 = vmul.f32 %v811, 1.442695
          %v843 = vpow.pop %v842
          %v844 = vadd.f32 %v813, %v815
          %v845 = vadd.f32 %v844, %v817
          %v846 = vadd.f32 %v845, %v819
          %v847 = vadd.f32 %v846, %v821
          %v848 = vadd.f32 %v847, %v823
          %v849 = vadd.f32 %v848, %v825
          %v850 = vadd.f32 %v849, %v827
          %v851 = vadd.f32 %v850, %v829
          %v852 = vadd.f32 %v851, %v831
          %v853 = vadd.f32 %v852, %v833
          %v854 = vadd.f32 %v853, %v835
          %v855 = vadd.f32 %v854, %v837
          %v856 = vadd.f32 %v855, %v839
          %v857 = vadd.f32 %v856, %v841
          %v858 = vadd.f32 %v857, %v843
          %v859 = vrot.slane %v858, 4
          %v860 = vadd.f32 %v858, %v859
          %v861 = vrot.slane %v860, 2
          %v862 = vadd.f32 %v860, %v861
          %v863 = vrot.slane %v862, 1
          %v864 = vadd.f32 %v862, %v863
          %865 = vmatprep.subr.mxu0 0.0
          %866 = vmatpush1.msra.mxu0 %v813
          %867 = vmatprep.subr.mxu0 0.0
          %868 = vmatpush1.msra.mxu0 %v815
          %869 = vmatprep.subr.mxu0 0.0
          %870 = vmatpush1.msra.mxu0 %v817
          %871 = vmatprep.subr.mxu0 0.0
          %872 = vmatpush1.msra.mxu0 %v819
          %873 = vmatprep.subr.mxu0 0.0
          %874 = vmatpush1.msra.mxu0 %v821
          %875 = vmatprep.subr.mxu0 0.0
          %876 = vmatpush1.msra.mxu0 %v823
          %877 = vmatprep.subr.mxu0 0.0
          %878 = vmatpush1.msra.mxu0 %v825
          %879 = vmatprep.subr.mxu0 0.0
          %880 = vmatpush1.msra.mxu0 %v827
          %881 = vmatprep.subr.mxu0 0.0
          %882 = vmatpush1.msra.mxu0 %v829
          %883 = vmatprep.subr.mxu0 0.0
          %884 = vmatpush1.msra.mxu0 %v831
          %885 = vmatprep.subr.mxu0 0.0
          %886 = vmatpush1.msra.mxu0 %v833
          %887 = vmatprep.subr.mxu0 0.0
          %888 = vmatpush1.msra.mxu0 %v835
          %889 = vmatprep.subr.mxu0 0.0
          %890 = vmatpush1.msra.mxu0 %v837
          %891 = vmatprep.subr.mxu0 0.0
          %892 = vmatpush1.msra.mxu0 %v839
          %893 = vmatprep.subr.mxu0 0.0
          %894 = vmatpush1.msra.mxu0 %v841
          %895 = vmatprep.subr.mxu0 0.0
          %896 = vmatpush1.msra.mxu0 %v843
          %897 = vmatprep.subr.mxu0 0.0
          %898 = vmatpush1.msra.mxu0 0.0
          %899 = vmatprep.subr.mxu0 0.0
          %900 = vmatpush1.msra.mxu0 0.0
          %901 = vmatprep.subr.mxu0 0.0
          %902 = vmatpush1.msra.mxu0 0.0
          %903 = vmatprep.subr.mxu0 0.0
          %904 = vmatpush1.msra.mxu0 0.0
          %905 = vmatprep.subr.mxu0 0.0
          %906 = vmatpush1.msra.mxu0 0.0
          %907 = vmatprep.subr.mxu0 0.0
          %908 = vmatpush1.msra.mxu0 0.0
          %909 = vmatprep.subr.mxu0 0.0
          %910 = vmatpush1.msra.mxu0 0.0
          %911 = vmatprep.subr.mxu0 0.0
          %912 = vmatpush1.msra.mxu0 0.0
          %913 = vmatprep.subr.mxu0 0.0
          %914 = vmatpush1.msra.mxu0 0.0
          %915 = vmatprep.subr.mxu0 0.0
          %916 = vmatpush1.msra.mxu0 0.0
          %917 = vmatprep.subr.mxu0 0.0
          %918 = vmatpush1.msra.mxu0 0.0
          %919 = vmatprep.subr.mxu0 0.0
          %920 = vmatpush1.msra.mxu0 0.0
          %921 = vmatprep.subr.mxu0 0.0
          %922 = vmatpush1.msra.mxu0 0.0
          %923 = vmatprep.subr.mxu0 0.0
          %924 = vmatpush1.msra.mxu0 0.0
          %925 = vmatprep.subr.mxu0 0.0
          %926 = vmatpush1.msra.mxu0 0.0
          %927 = vmatprep.subr.mxu0 0.0
          %928 = vmatpush1.msra.mxu0 0.0
          %929 = vmatprep.mubr.f32.mxu0 0.0
          %930 = vmatmul.mubr.f32.gmra.mrb[0].mxu0 %v534
          %v931 = vpop.f32.mrb[0].mxu0
          %v932 = vadd.f32 0.0, %v931
          %v933 = vpop.f32.mrb[0].mxu0
          %934 = vdwg.mxu0
          %v935 = vld [vmem:[#allocation4] sm:$0x1]
          %v936 = vmul.f32 %v789, %v935
          %v937 = vadd.f32 %v936, %v864
          %938 = vst [vmem:[#allocation4] sm:$0x1] %v937
          %v939 = vld [vmem:[#allocation5] sm:$0xff]
          %v941 = vlaneseq
          %v942 = vshrl.u32 %v941, 7
          %v943 = vsub.s32 0, %v942
          %v944 = vrot.slane %v789, %v943
          %v946 = vmul.f32 %v944, %v939
          %v947 = vadd.f32 %v946, %v932
          %948 = vst [vmem:[#allocation5] sm:$0xff] %v947
          %949 = vst [vmem:[#allocation3] sm:$0x1] %v786
        $region52: #{tpu_custom_call.1} parent=43 // pred_fallthru
          _
        %p950 = scmp.eq.s32.totalorder %s336, %s335
        // Predicated region
        $region53: #{tpu_custom_call.1} parent=43 // pred_check
          %p951 = pneg %p950
        $region54: #{tpu_custom_call.1} parent=43 // pred_check_branch
          %953 = sbr.rel (%p951) target = $region56
        $region55: #{tpu_custom_call.1} parent=43 // pred_region
          %v954 = vld [vmem:[%s6] sm:$0xff]
          %v955 = vld [vmem:[%s6 + $0x8] sm:$0xff]
          %v956 = vld [vmem:[%s332] sm:$0xf]
          %v957 = vld [vmem:[%s7] sm:$0xff]
          %v958 = vld [vmem:[%s7 + $0x8] sm:$0xff]
          %960 = vset.pattern.permute.xlu0 0
          %961 = vperm.xlu0 %960, %v957
          %v962 = vpop.permute.xlu0 %961
          %965 = vset.pattern.permute.xlu0 0
          %966 = vperm.xlu0 %965, %v958
          %v967 = vpop.permute.xlu0 %966
          %vm969 = vcmask 31744
          %v971 = vsel %vm969, %v954, 0
          %v974 = vsel %vm969, %v955, 0
          %vm976 = vcmask 1043456
          %v978 = vsel %vm976, %v956, 0
          %980 = vmatprep.subr.mxu0 0.0
          %981 = vmatpush1.msra.mxu0 %v978
          %982 = vmatprep.subr.mxu0 0.0
          %983 = vmatpush1.msra.mxu0 0.0
          %984 = vmatprep.subr.mxu0 0.0
          %985 = vmatpush1.msra.mxu0 0.0
          %986 = vmatprep.subr.mxu0 0.0
          %987 = vmatpush1.msra.mxu0 0.0
          %988 = vmatprep.subr.mxu0 0.0
          %989 = vmatpush1.msra.mxu0 0.0
          %990 = vmatprep.subr.mxu0 0.0
          %991 = vmatpush1.msra.mxu0 0.0
          %992 = vmatprep.subr.mxu0 0.0
          %993 = vmatpush1.msra.mxu0 0.0
          %994 = vmatprep.subr.mxu0 0.0
          %995 = vmatpush1.msra.mxu0 0.0
          %996 = vmatprep.subr.mxu0 0.0
          %997 = vmatpush1.msra.mxu0 0.0
          %998 = vmatprep.subr.mxu0 0.0
          %999 = vmatpush1.msra.mxu0 0.0
          %1000 = vmatprep.subr.mxu0 0.0
          %1001 = vmatpush1.msra.mxu0 0.0
          %1002 = vmatprep.subr.mxu0 0.0
          %1003 = vmatpush1.msra.mxu0 0.0
          %1004 = vmatprep.subr.mxu0 0.0
          %1005 = vmatpush1.msra.mxu0 0.0
          %1006 = vmatprep.subr.mxu0 0.0
          %1007 = vmatpush1.msra.mxu0 0.0
          %1008 = vmatprep.subr.mxu0 0.0
          %1009 = vmatpush1.msra.mxu0 0.0
          %1010 = vmatprep.subr.mxu0 0.0
          %1011 = vmatpush1.msra.mxu0 0.0
          %1012 = vmatprep.subr.mxu0 0.0
          %1013 = vmatpush1.msra.mxu0 0.0
          %1014 = vmatprep.subr.mxu0 0.0
          %1015 = vmatpush1.msra.mxu0 0.0
          %1016 = vmatprep.subr.mxu0 0.0
          %1017 = vmatpush1.msra.mxu0 0.0
          %1018 = vmatprep.subr.mxu0 0.0
          %1019 = vmatpush1.msra.mxu0 0.0
          %1020 = vmatprep.subr.mxu0 0.0
          %1021 = vmatpush1.msra.mxu0 0.0
          %1022 = vmatprep.subr.mxu0 0.0
          %1023 = vmatpush1.msra.mxu0 0.0
          %1024 = vmatprep.subr.mxu0 0.0
          %1025 = vmatpush1.msra.mxu0 0.0
          %1026 = vmatprep.subr.mxu0 0.0
          %1027 = vmatpush1.msra.mxu0 0.0
          %1028 = vmatprep.subr.mxu0 0.0
          %1029 = vmatpush1.msra.mxu0 0.0
          %1030 = vmatprep.subr.mxu0 0.0
          %1031 = vmatpush1.msra.mxu0 0.0
          %1032 = vmatprep.subr.mxu0 0.0
          %1033 = vmatpush1.msra.mxu0 0.0
          %1034 = vmatprep.subr.mxu0 0.0
          %1035 = vmatpush1.msra.mxu0 0.0
          %1036 = vmatprep.subr.mxu0 0.0
          %1037 = vmatpush1.msra.mxu0 0.0
          %1038 = vmatprep.subr.mxu0 0.0
          %1039 = vmatpush1.msra.mxu0 0.0
          %1040 = vmatprep.subr.mxu0 0.0
          %1041 = vmatpush1.msra.mxu0 0.0
          %1042 = vmatprep.subr.mxu0 0.0
          %1043 = vmatpush1.msra.mxu0 0.0
          %1044 = vmatprep.mubr.f32.mxu0 0.0
          %1045 = vmatmul.mubr.f32.gmra.mrb[0].mxu0 %v971
          %v1046 = vpop.f32.mrb[0].mxu0
          %v1047 = vadd.f32 %v962, %v1046
          %v1048 = vpop.f32.mrb[0].mxu0
          %1049 = vmatprep.mubr.f32.mxu0 0.0
          %1050 = vmatmul.mubr.f32.gmra.mrb[0].mxu0 %v974
          %v1051 = vpop.f32.mrb[0].mxu0
          %v1052 = vadd.f32 %v967, %v1051
          %v1053 = vpop.f32.mrb[0].mxu0
          %1054 = vdwg.mxu0
          %v1055 = vld [vmem:[#allocation2] sm:$0xff]
          %1056 = vxpose.xlu0.b32.start [1/16] %v1047, 128
          %1057 = vxpose.xlu0.b32.cont [2/16] 0.0, 128
          %1058 = vxpose.xlu0.b32.cont [3/16] 0.0, 128
          %1059 = vxpose.xlu0.b32.cont [4/16] 0.0, 128
          %1060 = vxpose.xlu0.b32.cont [5/16] 0.0, 128
          %1061 = vxpose.xlu0.b32.cont [6/16] 0.0, 128
          %1062 = vxpose.xlu0.b32.cont [7/16] 0.0, 128
          %1063 = vxpose.xlu0.b32.cont [8/16] 0.0, 128
          %1064 = vxpose.xlu0.b32.cont [9/16] 0.0, 128
          %1065 = vxpose.xlu0.b32.cont [10/16] 0.0, 128
          %1066 = vxpose.xlu0.b32.cont [11/16] 0.0, 128
          %1067 = vxpose.xlu0.b32.cont [12/16] 0.0, 128
          %1068 = vxpose.xlu0.b32.cont [13/16] 0.0, 128
          %1069 = vxpose.xlu0.b32.cont [14/16] 0.0, 128
          %1070 = vxpose.xlu0.b32.cont [15/16] 0.0, 128
          %1071 = vxpose.xlu0.b32.end [16/16] 0.0, 128
          %v1072 = vpop.trf.xlu0
          %v1073 = vpop.trf.xlu0
          %v1074 = vpop.trf.xlu0
          %v1075 = vpop.trf.xlu0
          %v1076 = vpop.trf.xlu0
          %v1077 = vpop.trf.xlu0
          %v1078 = vpop.trf.xlu0
          %v1079 = vpop.trf.xlu0
          %v1080 = vpop.trf.xlu0
          %v1081 = vpop.trf.xlu0
          %v1082 = vpop.trf.xlu0
          %v1083 = vpop.trf.xlu0
          %v1084 = vpop.trf.xlu0
          %v1085 = vpop.trf.xlu0
          %v1086 = vpop.trf.xlu0
          %v1087 = vpop.trf.xlu0
          %vm1088 = vcmask 64512
          %v1090 = vsel %vm1088, %v1072, 0
          %v1093 = vsel %vm1088, %v1073, 0
          %v1096 = vsel %vm1088, %v1074, 0
          %v1099 = vsel %vm1088, %v1075, 0
          %v1102 = vsel %vm1088, %v1076, 0
          %v1105 = vsel %vm1088, %v1077, 0
          %v1108 = vsel %vm1088, %v1078, 0
          %v1111 = vsel %vm1088, %v1079, 0
          %v1114 = vsel %vm1088, %v1080, 0
          %v1117 = vsel %vm1088, %v1081, 0
          %v1120 = vsel %vm1088, %v1082, 0
          %v1123 = vsel %vm1088, %v1083, 0
          %v1126 = vsel %vm1088, %v1084, 0
          %v1129 = vsel %vm1088, %v1085, 0
          %v1132 = vsel %vm1088, %v1086, 0
          %v1135 = vsel %vm1088, %v1087, 0
          %1137 = vmatprep.subr.mxu0 0.0
          %1138 = vmatpush1.msra.mxu0 %v1055
          %1139 = vmatprep.subr.mxu0 0.0
          %1140 = vmatpush1.msra.mxu0 0.0
          %1141 = vmatprep.subr.mxu0 0.0
          %1142 = vmatpush1.msra.mxu0 0.0
          %1143 = vmatprep.subr.mxu0 0.0
          %1144 = vmatpush1.msra.mxu0 0.0
          %1145 = vmatprep.subr.mxu0 0.0
          %1146 = vmatpush1.msra.mxu0 0.0
          %1147 = vmatprep.subr.mxu0 0.0
          %1148 = vmatpush1.msra.mxu0 0.0
          %1149 = vmatprep.subr.mxu0 0.0
          %1150 = vmatpush1.msra.mxu0 0.0
          %1151 = vmatprep.subr.mxu0 0.0
          %1152 = vmatpush1.msra.mxu0 0.0
          %1153 = vmatprep.subr.mxu0 0.0
          %1154 = vmatpush1.msra.mxu0 0.0
          %1155 = vmatprep.subr.mxu0 0.0
          %1156 = vmatpush1.msra.mxu0 0.0
          %1157 = vmatprep.subr.mxu0 0.0
          %1158 = vmatpush1.msra.mxu0 0.0
          %1159 = vmatprep.subr.mxu0 0.0
          %1160 = vmatpush1.msra.mxu0 0.0
          %1161 = vmatprep.subr.mxu0 0.0
          %1162 = vmatpush1.msra.mxu0 0.0
          %1163 = vmatprep.subr.mxu0 0.0
          %1164 = vmatpush1.msra.mxu0 0.0
          %1165 = vmatprep.subr.mxu0 0.0
          %1166 = vmatpush1.msra.mxu0 0.0
          %1167 = vmatprep.subr.mxu0 0.0
          %1168 = vmatpush1.msra.mxu0 0.0
          %1169 = vmatprep.subr.mxu0 0.0
          %1170 = vmatpush1.msra.mxu0 0.0
          %1171 = vmatprep.subr.mxu0 0.0
          %1172 = vmatpush1.msra.mxu0 0.0
          %1173 = vmatprep.subr.mxu0 0.0
          %1174 = vmatpush1.msra.mxu0 0.0
          %1175 = vmatprep.subr.mxu0 0.0
          %1176 = vmatpush1.msra.mxu0 0.0
          %1177 = vmatprep.subr.mxu0 0.0
          %1178 = vmatpush1.msra.mxu0 0.0
          %1179 = vmatprep.subr.mxu0 0.0
          %1180 = vmatpush1.msra.mxu0 0.0
          %1181 = vmatprep.subr.mxu0 0.0
          %1182 = vmatpush1.msra.mxu0 0.0
          %1183 = vmatprep.subr.mxu0 0.0
          %1184 = vmatpush1.msra.mxu0 0.0
          %1185 = vmatprep.subr.mxu0 0.0
          %1186 = vmatpush1.msra.mxu0 0.0
          %1187 = vmatprep.subr.mxu0 0.0
          %1188 = vmatpush1.msra.mxu0 0.0
          %1189 = vmatprep.subr.mxu0 0.0
          %1190 = vmatpush1.msra.mxu0 0.0
          %1191 = vmatprep.subr.mxu0 0.0
          %1192 = vmatpush1.msra.mxu0 0.0
          %1193 = vmatprep.subr.mxu0 0.0
          %1194 = vmatpush1.msra.mxu0 0.0
          %1195 = vmatprep.subr.mxu0 0.0
          %1196 = vmatpush1.msra.mxu0 0.0
          %1197 = vmatprep.subr.mxu0 0.0
          %1198 = vmatpush1.msra.mxu0 0.0
          %1199 = vmatprep.subr.mxu0 0.0
          %1200 = vmatpush1.msra.mxu0 0.0
          %1201 = vmatprep.mubr.f32.mxu0 0.0
          %1202 = vmatmul.mubr.f32.gmra.mrb[0].mxu0 %v1090
          %v1203 = vpop.f32.mrb[0].mxu0
          %v1204 = vadd.f32 0.0, %v1203
          %v1205 = vpop.f32.mrb[0].mxu0
          %1206 = vmatprep.mubr.f32.mxu0 0.0
          %1207 = vmatmul.mubr.f32.gmra.mrb[0].mxu0 %v1093
          %v1208 = vpop.f32.mrb[0].mxu0
          %v1209 = vadd.f32 0.0, %v1208
          %v1210 = vpop.f32.mrb[0].mxu0
          %1211 = vmatprep.mubr.f32.mxu0 0.0
          %1212 = vmatmul.mubr.f32.gmra.mrb[0].mxu0 %v1096
          %v1213 = vpop.f32.mrb[0].mxu0
          %v1214 = vadd.f32 0.0, %v1213
          %v1215 = vpop.f32.mrb[0].mxu0
          %1216 = vmatprep.mubr.f32.mxu0 0.0
          %1217 = vmatmul.mubr.f32.gmra.mrb[0].mxu0 %v1099
          %v1218 = vpop.f32.mrb[0].mxu0
          %v1219 = vadd.f32 0.0, %v1218
          %v1220 = vpop.f32.mrb[0].mxu0
          %1221 = vmatprep.mubr.f32.mxu0 0.0
          %1222 = vmatmul.mubr.f32.gmra.mrb[0].mxu0 %v1102
          %v1223 = vpop.f32.mrb[0].mxu0
          %v1224 = vadd.f32 0.0, %v1223
          %v1225 = vpop.f32.mrb[0].mxu0
          %1226 = vmatprep.mubr.f32.mxu0 0.0
          %1227 = vmatmul.mubr.f32.gmra.mrb[0].mxu0 %v1105
          %v1228 = vpop.f32.mrb[0].mxu0
          %v1229 = vadd.f32 0.0, %v1228
          %v1230 = vpop.f32.mrb[0].mxu0
          %1231 = vmatprep.mubr.f32.mxu0 0.0
          %1232 = vmatmul.mubr.f32.gmra.mrb[0].mxu0 %v1108
          %v1233 = vpop.f32.mrb[0].mxu0
          %v1234 = vadd.f32 0.0, %v1233
          %v1235 = vpop.f32.mrb[0].mxu0
          %1236 = vmatprep.mubr.f32.mxu0 0.0
          %1237 = vmatmul.mubr.f32.gmra.mrb[0].mxu0 %v1111
          %v1238 = vpop.f32.mrb[0].mxu0
          %v1239 = vadd.f32 0.0, %v1238
          %v1240 = vpop.f32.mrb[0].mxu0
          %1241 = vmatprep.mubr.f32.mxu0 0.0
          %1242 = vmatmul.mubr.f32.gmra.mrb[0].mxu0 %v1114
          %v1243 = vpop.f32.mrb[0].mxu0
          %v1244 = vadd.f32 0.0, %v1243
          %v1245 = vpop.f32.mrb[0].mxu0
          %1246 = vmatprep.mubr.f32.mxu0 0.0
          %1247 = vmatmul.mubr.f32.gmra.mrb[0].mxu0 %v1117
          %v1248 = vpop.f32.mrb[0].mxu0
          %v1249 = vadd.f32 0.0, %v1248
          %v1250 = vpop.f32.mrb[0].mxu0
          %1251 = vmatprep.mubr.f32.mxu0 0.0
          %1252 = vmatmul.mubr.f32.gmra.mrb[0].mxu0 %v1120
          %v1253 = vpop.f32.mrb[0].mxu0
          %v1254 = vadd.f32 0.0, %v1253
          %v1255 = vpop.f32.mrb[0].mxu0
          %1256 = vmatprep.mubr.f32.mxu0 0.0
          %1257 = vmatmul.mubr.f32.gmra.mrb[0].mxu0 %v1123
          %v1258 = vpop.f32.mrb[0].mxu0
          %v1259 = vadd.f32 0.0, %v1258
          %v1260 = vpop.f32.mrb[0].mxu0
          %1261 = vmatprep.mubr.f32.mxu0 0.0
          %1262 = vmatmul.mubr.f32.gmra.mrb[0].mxu0 %v1126
          %v1263 = vpop.f32.mrb[0].mxu0
          %v1264 = vadd.f32 0.0, %v1263
          %v1265 = vpop.f32.mrb[0].mxu0
          %1266 = vmatprep.mubr.f32.mxu0 0.0
          %1267 = vmatmul.mubr.f32.gmra.mrb[0].mxu0 %v1129
          %v1268 = vpop.f32.mrb[0].mxu0
          %v1269 = vadd.f32 0.0, %v1268
          %v1270 = vpop.f32.mrb[0].mxu0
          %1271 = vmatprep.mubr.f32.mxu0 0.0
          %1272 = vmatmul.mubr.f32.gmra.mrb[0].mxu0 %v1132
          %v1273 = vpop.f32.mrb[0].mxu0
          %v1274 = vadd.f32 0.0, %v1273
          %v1275 = vpop.f32.mrb[0].mxu0
          %1276 = vmatprep.mubr.f32.mxu0 0.0
          %1277 = vmatmul.mubr.f32.gmra.mrb[0].mxu0 %v1135
          %v1278 = vpop.f32.mrb[0].mxu0
          %v1279 = vadd.f32 0.0, %v1278
          %v1280 = vpop.f32.mrb[0].mxu0
          %1281 = vdwg.mxu0
          %v1282 = vlaneseq
          %v1283 = vshrl.u32 %v1282, 7
          %v1284 = vadd.s32 %v1283, 8
          %v1285 = vadd.s32 %v1283, 16
          %v1286 = vadd.s32 %v1283, 24
          %v1287 = vadd.s32 %v1283, 32
          %v1288 = vadd.s32 %v1283, 40
          %v1289 = vadd.s32 %v1283, 48
          %v1290 = vadd.s32 %v1283, 56
          %v1291 = vadd.s32 %v1283, 64
          %v1292 = vadd.s32 %v1283, 72
          %v1293 = vadd.s32 %v1283, 80
          %v1294 = vadd.s32 %v1283, 88
          %v1295 = vadd.s32 %v1283, 96
          %v1296 = vadd.s32 %v1283, 104
          %v1297 = vadd.s32 %v1283, 112
          %v1298 = vadd.s32 %v1283, 120
          %v1299 = vlaneseq
          %v1300 = vand.u32 %v1299, 127
          %vm1301 = vcmp.lt.s32.totalorder %v1283, %v1300
          %vm1302 = vcmp.lt.s32.totalorder %v1284, %v1300
          %vm1303 = vcmp.lt.s32.totalorder %v1285, %v1300
          %vm1304 = vcmp.lt.s32.totalorder %v1286, %v1300
          %vm1305 = vcmp.lt.s32.totalorder %v1287, %v1300
          %vm1306 = vcmp.lt.s32.totalorder %v1288, %v1300
          %vm1307 = vcmp.lt.s32.totalorder %v1289, %v1300
          %vm1308 = vcmp.lt.s32.totalorder %v1290, %v1300
          %vm1309 = vcmp.lt.s32.totalorder %v1291, %v1300
          %vm1310 = vcmp.lt.s32.totalorder %v1292, %v1300
          %vm1311 = vcmp.lt.s32.totalorder %v1293, %v1300
          %vm1312 = vcmp.lt.s32.totalorder %v1294, %v1300
          %vm1313 = vcmp.lt.s32.totalorder %v1295, %v1300
          %vm1314 = vcmp.lt.s32.totalorder %v1296, %v1300
          %vm1315 = vcmp.lt.s32.totalorder %v1297, %v1300
          %vm1316 = vcmp.lt.s32.totalorder %v1298, %v1300
          %v1317 = vsel %vm1301, %v1204, -1e+30
          %v1318 = vsel %vm1302, %v1209, -1e+30
          %v1319 = vsel %vm1303, %v1214, -1e+30
          %v1320 = vsel %vm1304, %v1219, -1e+30
          %v1321 = vsel %vm1305, %v1224, -1e+30
          %v1322 = vsel %vm1306, %v1229, -1e+30
          %v1323 = vsel %vm1307, %v1234, -1e+30
          %v1324 = vsel %vm1308, %v1239, -1e+30
          %v1325 = vsel %vm1309, %v1244, -1e+30
          %v1326 = vsel %vm1310, %v1249, -1e+30
          %v1327 = vsel %vm1311, %v1254, -1e+30
          %v1328 = vsel %vm1312, %v1259, -1e+30
          %v1329 = vsel %vm1313, %v1264, -1e+30
          %v1330 = vsel %vm1314, %v1269, -1e+30
          %v1331 = vsel %vm1315, %v1274, -1e+30
          %v1332 = vsel %vm1316, %v1279, -1e+30
          %v1333 = vld [vmem:[#allocation3] sm:$0x1]
          %v1334 = vmax.f32 %v1317, %v1321
          %v1335 = vmax.f32 %v1318, %v1322
          %v1336 = vmax.f32 %v1319, %v1323
          %v1337 = vmax.f32 %v1320, %v1324
          %v1338 = vmax.f32 %v1334, %v1325
          %v1339 = vmax.f32 %v1335, %v1326
          %v1340 = vmax.f32 %v1336, %v1327
          %v1341 = vmax.f32 %v1337, %v1328
          %v1342 = vmax.f32 %v1338, %v1329
          %v1343 = vmax.f32 %v1339, %v1330
          %v1344 = vmax.f32 %v1340, %v1331
          %v1345 = vmax.f32 %v1341, %v1332
          %v1346 = vmax.f32 %v1342, %v1343
          %v1347 = vmax.f32 %v1344, %v1345
          %v1348 = vmax.f32 %v1346, %v1347
          %v1349 = vrot.slane %v1348, 4
          %v1350 = vmax.f32 %v1348, %v1349
          %v1351 = vrot.slane %v1350, 2
          %v1352 = vmax.f32 %v1350, %v1351
          %v1353 = vrot.slane %v1352, 1
          %v1354 = vmax.f32 %v1352, %v1353
          %v1355 = vmax.f32 %v1333, %v1354
          %v1356 = vsub.f32 %v1333, %v1355
          %v1357 = vmul.f32 %v1356, 1.442695
          %v1358 = vpow.pop %v1357
          %v1360 = vlaneseq
          %v1361 = vshrl.u32 %v1360, 7
          %v1362 = vsub.s32 0, %v1361
          %v1363 = vrot.slane %v1355, %v1362
          %v1365 = vsub.f32 %v1317, %v1363
          %v1366 = vsub.f32 %v1318, %v1363
          %v1367 = vsub.f32 %v1319, %v1363
          %v1368 = vsub.f32 %v1320, %v1363
          %v1369 = vsub.f32 %v1321, %v1363
          %v1370 = vsub.f32 %v1322, %v1363
          %v1371 = vsub.f32 %v1323, %v1363
          %v1372 = vsub.f32 %v1324, %v1363
          %v1373 = vsub.f32 %v1325, %v1363
          %v1374 = vsub.f32 %v1326, %v1363
          %v1375 = vsub.f32 %v1327, %v1363
          %v1376 = vsub.f32 %v1328, %v1363
          %v1377 = vsub.f32 %v1329, %v1363
          %v1378 = vsub.f32 %v1330, %v1363
          %v1379 = vsub.f32 %v1331, %v1363
          %v1380 = vsub.f32 %v1332, %v1363
          %v1381 = vmul.f32 %v1365, 1.442695
          %v1382 = vpow.pop %v1381
          %v1383 = vmul.f32 %v1366, 1.442695
          %v1384 = vpow.pop %v1383
          %v1385 = vmul.f32 %v1367, 1.442695
          %v1386 = vpow.pop %v1385
          %v1387 = vmul.f32 %v1368, 1.442695
          %v1388 = vpow.pop %v1387
          %v1389 = vmul.f32 %v1369, 1.442695
          %v1390 = vpow.pop %v1389
          %v1391 = vmul.f32 %v1370, 1.442695
          %v1392 = vpow.pop %v1391
          %v1393 = vmul.f32 %v1371, 1.442695
          %v1394 = vpow.pop %v1393
          %v1395 = vmul.f32 %v1372, 1.442695
          %v1396 = vpow.pop %v1395
          %v1397 = vmul.f32 %v1373, 1.442695
          %v1398 = vpow.pop %v1397
          %v1399 = vmul.f32 %v1374, 1.442695
          %v1400 = vpow.pop %v1399
          %v1401 = vmul.f32 %v1375, 1.442695
          %v1402 = vpow.pop %v1401
          %v1403 = vmul.f32 %v1376, 1.442695
          %v1404 = vpow.pop %v1403
          %v1405 = vmul.f32 %v1377, 1.442695
          %v1406 = vpow.pop %v1405
          %v1407 = vmul.f32 %v1378, 1.442695
          %v1408 = vpow.pop %v1407
          %v1409 = vmul.f32 %v1379, 1.442695
          %v1410 = vpow.pop %v1409
          %v1411 = vmul.f32 %v1380, 1.442695
          %v1412 = vpow.pop %v1411
          %v1413 = vadd.f32 %v1382, %v1384
          %v1414 = vadd.f32 %v1413, %v1386
          %v1415 = vadd.f32 %v1414, %v1388
          %v1416 = vadd.f32 %v1415, %v1390
          %v1417 = vadd.f32 %v1416, %v1392
          %v1418 = vadd.f32 %v1417, %v1394
          %v1419 = vadd.f32 %v1418, %v1396
          %v1420 = vadd.f32 %v1419, %v1398
          %v1421 = vadd.f32 %v1420, %v1400
          %v1422 = vadd.f32 %v1421, %v1402
          %v1423 = vadd.f32 %v1422, %v1404
          %v1424 = vadd.f32 %v1423, %v1406
          %v1425 = vadd.f32 %v1424, %v1408
          %v1426 = vadd.f32 %v1425, %v1410
          %v1427 = vadd.f32 %v1426, %v1412
          %v1428 = vrot.slane %v1427, 4
          %v1429 = vadd.f32 %v1427, %v1428
          %v1430 = vrot.slane %v1429, 2
          %v1431 = vadd.f32 %v1429, %v1430
          %v1432 = vrot.slane %v1431, 1
          %v1433 = vadd.f32 %v1431, %v1432
          %1434 = vmatprep.subr.mxu0 0.0
          %1435 = vmatpush1.msra.mxu0 %v1382
          %1436 = vmatprep.subr.mxu0 0.0
          %1437 = vmatpush1.msra.mxu0 %v1384
          %1438 = vmatprep.subr.mxu0 0.0
          %1439 = vmatpush1.msra.mxu0 %v1386
          %1440 = vmatprep.subr.mxu0 0.0
          %1441 = vmatpush1.msra.mxu0 %v1388
          %1442 = vmatprep.subr.mxu0 0.0
          %1443 = vmatpush1.msra.mxu0 %v1390
          %1444 = vmatprep.subr.mxu0 0.0
          %1445 = vmatpush1.msra.mxu0 %v1392
          %1446 = vmatprep.subr.mxu0 0.0
          %1447 = vmatpush1.msra.mxu0 %v1394
          %1448 = vmatprep.subr.mxu0 0.0
          %1449 = vmatpush1.msra.mxu0 %v1396
          %1450 = vmatprep.subr.mxu0 0.0
          %1451 = vmatpush1.msra.mxu0 %v1398
          %1452 = vmatprep.subr.mxu0 0.0
          %1453 = vmatpush1.msra.mxu0 %v1400
          %1454 = vmatprep.subr.mxu0 0.0
          %1455 = vmatpush1.msra.mxu0 %v1402
          %1456 = vmatprep.subr.mxu0 0.0
          %1457 = vmatpush1.msra.mxu0 %v1404
          %1458 = vmatprep.subr.mxu0 0.0
          %1459 = vmatpush1.msra.mxu0 %v1406
          %1460 = vmatprep.subr.mxu0 0.0
          %1461 = vmatpush1.msra.mxu0 %v1408
          %1462 = vmatprep.subr.mxu0 0.0
          %1463 = vmatpush1.msra.mxu0 %v1410
          %1464 = vmatprep.subr.mxu0 0.0
          %1465 = vmatpush1.msra.mxu0 %v1412
          %1466 = vmatprep.subr.mxu0 0.0
          %1467 = vmatpush1.msra.mxu0 0.0
          %1468 = vmatprep.subr.mxu0 0.0
          %1469 = vmatpush1.msra.mxu0 0.0
          %1470 = vmatprep.subr.mxu0 0.0
          %1471 = vmatpush1.msra.mxu0 0.0
          %1472 = vmatprep.subr.mxu0 0.0
          %1473 = vmatpush1.msra.mxu0 0.0
          %1474 = vmatprep.subr.mxu0 0.0
          %1475 = vmatpush1.msra.mxu0 0.0
          %1476 = vmatprep.subr.mxu0 0.0
          %1477 = vmatpush1.msra.mxu0 0.0
          %1478 = vmatprep.subr.mxu0 0.0
          %1479 = vmatpush1.msra.mxu0 0.0
          %1480 = vmatprep.subr.mxu0 0.0
          %1481 = vmatpush1.msra.mxu0 0.0
          %1482 = vmatprep.subr.mxu0 0.0
          %1483 = vmatpush1.msra.mxu0 0.0
          %1484 = vmatprep.subr.mxu0 0.0
          %1485 = vmatpush1.msra.mxu0 0.0
          %1486 = vmatprep.subr.mxu0 0.0
          %1487 = vmatpush1.msra.mxu0 0.0
          %1488 = vmatprep.subr.mxu0 0.0
          %1489 = vmatpush1.msra.mxu0 0.0
          %1490 = vmatprep.subr.mxu0 0.0
          %1491 = vmatpush1.msra.mxu0 0.0
          %1492 = vmatprep.subr.mxu0 0.0
          %1493 = vmatpush1.msra.mxu0 0.0
          %1494 = vmatprep.subr.mxu0 0.0
          %1495 = vmatpush1.msra.mxu0 0.0
          %1496 = vmatprep.subr.mxu0 0.0
          %1497 = vmatpush1.msra.mxu0 0.0
          %1498 = vmatprep.mubr.f32.mxu0 0.0
          %1499 = vmatmul.mubr.f32.gmra.mrb[0].mxu0 %v1052
          %v1500 = vpop.f32.mrb[0].mxu0
          %v1501 = vadd.f32 0.0, %v1500
          %v1502 = vpop.f32.mrb[0].mxu0
          %1503 = vdwg.mxu0
          %v1504 = vld [vmem:[#allocation4] sm:$0x1]
          %v1505 = vmul.f32 %v1358, %v1504
          %v1506 = vadd.f32 %v1505, %v1433
          %1507 = vst [vmem:[#allocation4] sm:$0x1] %v1506
          %v1508 = vld [vmem:[#allocation5] sm:$0xff]
          %v1510 = vlaneseq
          %v1511 = vshrl.u32 %v1510, 7
          %v1512 = vsub.s32 0, %v1511
          %v1513 = vrot.slane %v1358, %v1512
          %v1515 = vmul.f32 %v1513, %v1508
          %v1516 = vadd.f32 %v1515, %v1501
          %1517 = vst [vmem:[#allocation5] sm:$0xff] %v1516
          %1518 = vst [vmem:[#allocation3] sm:$0x1] %v1355
          %v1519 = vld [vmem:[#allocation4] sm:$0x1]
          %v1520 = vadd.f32 %v1519, 1e-06
          %v1521 = vrcp.pop %v1520
          %v1522 = vld [vmem:[#allocation3] sm:$0x1]
          %vm1523 = vcmp.gt.f32.partialorder %v1522, -5e+29
          %v1524 = vld [vmem:[#allocation5] sm:$0xff]
          %v1526 = vlaneseq
          %v1527 = vshrl.u32 %v1526, 7
          %v1528 = vsub.s32 0, %v1527
          %v1529 = vrot.slane %v1521, %v1528
          %v1531 = vmul.f32 %v1524, %v1529
          %v1532 = vsel %vm1523, 1, 0
          %v1533 = vlaneseq
          %v1534 = vshrl.u32 %v1533, 7
          %v1535 = vsub.s32 0, %v1534
          %v1536 = vrot.slane %v1532, %v1535
          %vm1537 = vcmp.eq.s32.totalorder %v1536, 1
          %v1538 = vsel %vm1537, %v1531, 0.0
          %1539 = vst [vmem:[%s313] sm:$0xff] %v1538
        $region56: #{tpu_custom_call.1} parent=43 // pred_fallthru
          _
        %s1540 = sand.u32 %s200, 1
        %s1541 = scalar_lea.sflag [#allocation10], %s1540
        %s1542 = sand.u32 %s200, 1
        %s1543 = smul.addr %s1542, 8
        %s1544 = scalar_lea.vmem [#allocation9], %s1543
        // Predicated region
        $region57: #{tpu_custom_call.1} parent=43 // pred_check
          %p1545 = pneg %p210
        $region58: #{tpu_custom_call.1} parent=43 // pred_check_branch
          %1547 = sbr.rel (%p1545) target = $region60
        $region59: #{tpu_custom_call.1} parent=43 // pred_region
          %s1548 = sld [smem:[#allocation7 + %s37]]
          %s1550 = ssub.s32 128, 128
          %1551 = vsyncadd %s1541, %s1550
          %s1552 = smul.addr %s36, 2
          %s1553 = sadd.s32 %s1548, %s1552
          %s1554 = smul.addr %s1553, 128
          %s1555 = scalar_lea.hbm %s8, %s1554
          %s1557 = sshll.u32 %s1544, 4
          %s1558 = int_to_ptr.vmem [resolvable:$true] %s1557
          %1560 = dma.vmem_to_hbm [thread:$0]  %s1558, 128, %s1555, %s1541
        $region60: #{tpu_custom_call.1} parent=43 // pred_fallthru
          _
      $region44: #{tpu_custom_call.1} parent=5 // pred_fallthru
        _
      %p1561 = scmp.le.s32.totalorder 2, %s27
      // Predicated region
      $region61: #{tpu_custom_call.1} parent=5 // pred_check
        %p1562 = pneg %p1561
      $region62: #{tpu_custom_call.1} parent=5 // pred_check_branch
        %1564 = sbr.rel (%p1562) target = $region64
      $region63: #{tpu_custom_call.1} parent=5 // pred_region
        %s1565 = ssub.s32 %s27, 2
        // Predicated region
        $region65: #{tpu_custom_call.1} parent=63 // pred_check
          %p1566 = pneg %p216
        $region66: #{tpu_custom_call.1} parent=63 // pred_check_branch
          %1568 = sbr.rel (%p1566) target = $region68
        $region67: #{tpu_custom_call.1} parent=63 // pred_region
          %s1569 = sand.u32 %s201, 1
          %s1570 = scalar_lea.sflag [#allocation10], %s1569
          %s1571 = sand.u32 %s201, 1
          %s1572 = smul.addr %s1571, 8
          %s1573 = scalar_lea.vmem [#allocation9], %s1572
          %1574 = dma.done %s1570, 128
        $region68: #{tpu_custom_call.1} parent=63 // pred_fallthru
          _
      $region64: #{tpu_custom_call.1} parent=5 // pred_fallthru
        _
    $region6: #{tpu_custom_call.1} parent=1 // loop_footer
      %s31 = sadd.s32 1, %s27
    $region7: #{tpu_custom_call.1} parent=1 // loop_footer_branch
      %26 = sbr.rel target = $region3
    $region8: #{tpu_custom_call.1} parent=1 // loop_exit
      _
    %1575 = vsyncpa [#allocation10], 1
    %s1576 = scalar_lea.sflag [#allocation10], 1
    %1577 = vsyncpa %s1576, 1

</llo_original>
